<compile_context>
chip_gen: v5e
topology: v5e:2x2
jax: 0.10.0
libtpu: 0.0.40
codegen_flags: <defaults>
</compile_context>

<pallas_src>
import jax
import jax.numpy as jnp
from jax.experimental import pallas as pl

IN_FEATURE = 69   # matches Prediction(in_feature=69)
HID = 512         # matches hid_units=512, contract=1
BATCH = 16        # small example batch


def _sigmoid(v):
    # Exact sigmoid (matches torch.sigmoid); exp goes to the EUP slot.
    return 1.0 / (1.0 + jnp.exp(-v))


def prediction_kernel(x_ref, w1_ref, wmid_ref, w2_ref, bias_ref, b2_ref, o_ref):
    x = x_ref[...]                                               # (B, IN)

    # out_mlp1 + ReLU
    hid = jnp.dot(x, w1_ref[...], preferred_element_type=jnp.float32)
    hid = jnp.maximum(hid + bias_ref[0:1, :], 0.0)               # (B, HID)

    # mid_mlp1 + ReLU
    mid = jnp.dot(hid, wmid_ref[0], preferred_element_type=jnp.float32)
    mid = jnp.maximum(mid + bias_ref[1:2, :], 0.0)               # (B, HID)

    # mid_mlp2 + ReLU
    mid = jnp.dot(mid, wmid_ref[1], preferred_element_type=jnp.float32)
    mid = jnp.maximum(mid + bias_ref[2:3, :], 0.0)               # (B, HID)

    # residual connection (res_con=True)
    hid = hid + mid

    # out_mlp2 (HID -> 1): broadcast-multiply + lane reduce, then sigmoid.
    logits = jnp.sum(hid * w2_ref[...], axis=-1, keepdims=True) + b2_ref[...]
    o_ref[...] = _sigmoid(logits)                                # (B, 1)


def prediction(features, params):
    """features: (N, IN_FEATURE) f32 -> (N, 1) f32."""
    w1, b1, wm1, bm1, wm2, bm2, w2, b2 = params
    # Host-side packing (in a real model this would be precomputed once).
    wmid = jnp.stack([wm1, wm2], axis=0)                 # (2, HID, HID)
    biases = jnp.stack([b1, bm1, bm2], axis=0)           # (3, HID)
    w2_row = w2.reshape(1, HID)                          # (1, HID)
    b2_mat = b2.reshape(1, 1)                            # (1, 1)
    n = features.shape[0]
    return pl.pallas_call(
        prediction_kernel,
        out_shape=jax.ShapeDtypeStruct((n, 1), jnp.float32),
        # No grid / no BlockSpecs: every operand is a single full-array VMEM
        # block and the kernel runs exactly once (zero pipeline overhead).
    )(features, w1, wmid, w2_row, biases, b2_mat)


# ---------------------------------------------------------------------------
# Pure-JAX reference (mirrors the PyTorch forward)
# ---------------------------------------------------------------------------
def prediction_ref(features, params):
    w1, b1, wm1, bm1, wm2, bm2, w2, b2 = params
    hid = jnp.maximum(features @ w1 + b1, 0.0)
    mid = jnp.maximum(hid @ wm1 + bm1, 0.0)
    mid = jnp.maximum(mid @ wm2 + bm2, 0.0)
    hid = hid + mid
    return _sigmoid(hid @ w2[:, None] + b2)


def make_params(key):
    ks = jax.random.split(key, 8)
    s = 0.05
    w1 = s * jax.random.normal(ks[0], (IN_FEATURE, HID), jnp.float32)
    b1 = s * jax.random.normal(ks[1], (HID,), jnp.float32)
    wm1 = s * jax.random.normal(ks[2], (HID, HID), jnp.float32)
    bm1 = s * jax.random.normal(ks[3], (HID,), jnp.float32)
    wm2 = s * jax.random.normal(ks[4], (HID, HID), jnp.float32)
    bm2 = s * jax.random.normal(ks[5], (HID,), jnp.float32)
    w2 = s * jax.random.normal(ks[6], (HID,), jnp.float32)
    b2 = s * jax.random.normal(ks[7], (), jnp.float32)
    return (w1, b1, wm1, bm1, wm2, bm2, w2, b2)


if __name__ == "__main__":
    key = jax.random.PRNGKey(0)
    kx, kp = jax.random.split(key)
    x = jax.random.normal(kx, (BATCH, IN_FEATURE), jnp.float32)
    params = make_params(kp)

    out = prediction(x, params)
    out = jax.block_until_ready(out)

    ref = prediction_ref(x, params)
    assert out.shape == (BATCH, 1)
    assert jnp.allclose(out, ref, atol=1e-4, rtol=1e-4), "mismatch vs reference"
    print("KERNEL_OK")
</pallas_src>

<mosaic_0001>
module attributes {stable_mosaic.version = 11 : i64} {
  func.func @prediction_kernel(%arg0: memref<16x69xf32, #tpu.memory_space<vmem>>, %arg1: memref<69x512xf32, #tpu.memory_space<vmem>>, %arg2: memref<2x512x512xf32, #tpu.memory_space<vmem>>, %arg3: memref<1x512xf32, #tpu.memory_space<vmem>>, %arg4: memref<3x512xf32, #tpu.memory_space<vmem>>, %arg5: memref<1x1xf32, #tpu.memory_space<vmem>>, %arg6: memref<16x1xf32, #tpu.memory_space<vmem>>) attributes {dimension_semantics = [], scalar_prefetch = 0 : i64, scratch_operands = 0 : i64, tpu.core_type = #tpu.core_type<tc>} {
    %c0 = arith.constant 0 : index
    %c0_0 = arith.constant 0 : index
    %0 = vector.load %arg0[%c0, %c0_0] : memref<16x69xf32, #tpu.memory_space<vmem>>, vector<16x69xf32>
    %c0_1 = arith.constant 0 : index
    %c0_2 = arith.constant 0 : index
    %1 = vector.load %arg1[%c0_1, %c0_2] : memref<69x512xf32, #tpu.memory_space<vmem>>, vector<69x512xf32>
    %cst = arith.constant dense<0.000000e+00> : vector<16x512xf32>
    %2 = tpu.matmul %0, %1, %cst {dimension_numbers = #tpu.dot_dimension_numbers<[1], [0], [0], [1], [0, 0, 1, 1], [], []>} : vector<16x69xf32>, vector<69x512xf32>, vector<16x512xf32> -> vector<16x512xf32>
    %c0_3 = arith.constant 0 : index
    %c0_4 = arith.constant 0 : index
    %3 = vector.load %arg4[%c0_3, %c0_4] : memref<3x512xf32, #tpu.memory_space<vmem>>, vector<1x512xf32>
    %4 = vector.broadcast %3 : vector<1x512xf32> to vector<16x512xf32>
    %5 = arith.addf %2, %4 : vector<16x512xf32>
    %cst_5 = arith.constant 0.000000e+00 : f32
    %6 = vector.broadcast %cst_5 : f32 to vector<16x512xf32>
    %7 = arith.maximumf %5, %6 : vector<16x512xf32>
    %c0_6 = arith.constant 0 : index
    %c0_7 = arith.constant 0 : index
    %c0_8 = arith.constant 0 : index
    %8 = vector.load %arg2[%c0_6, %c0_7, %c0_8] : memref<2x512x512xf32, #tpu.memory_space<vmem>>, vector<1x512x512xf32>
    %9 = vector.shape_cast %8 : vector<1x512x512xf32> to vector<512x512xf32>
    %cst_9 = arith.constant dense<0.000000e+00> : vector<16x512xf32>
    %10 = tpu.matmul %7, %9, %cst_9 {dimension_numbers = #tpu.dot_dimension_numbers<[1], [0], [0], [1], [0, 0, 1, 1], [], []>} : vector<16x512xf32>, vector<512x512xf32>, vector<16x512xf32> -> vector<16x512xf32>
    %c1 = arith.constant 1 : index
    %c0_10 = arith.constant 0 : index
    %11 = vector.load %arg4[%c1, %c0_10] : memref<3x512xf32, #tpu.memory_space<vmem>>, vector<1x512xf32>
    %12 = vector.broadcast %11 : vector<1x512xf32> to vector<16x512xf32>
    %13 = arith.addf %10, %12 : vector<16x512xf32>
    %cst_11 = arith.constant 0.000000e+00 : f32
    %14 = vector.broadcast %cst_11 : f32 to vector<16x512xf32>
    %15 = arith.maximumf %13, %14 : vector<16x512xf32>
    %c1_12 = arith.constant 1 : index
    %c0_13 = arith.constant 0 : index
    %c0_14 = arith.constant 0 : index
    %16 = vector.load %arg2[%c1_12, %c0_13, %c0_14] : memref<2x512x512xf32, #tpu.memory_space<vmem>>, vector<1x512x512xf32>
    %17 = vector.shape_cast %16 : vector<1x512x512xf32> to vector<512x512xf32>
    %cst_15 = arith.constant dense<0.000000e+00> : vector<16x512xf32>
    %18 = tpu.matmul %15, %17, %cst_15 {dimension_numbers = #tpu.dot_dimension_numbers<[1], [0], [0], [1], [0, 0, 1, 1], [], []>} : vector<16x512xf32>, vector<512x512xf32>, vector<16x512xf32> -> vector<16x512xf32>
    %c2 = arith.constant 2 : index
    %c0_16 = arith.constant 0 : index
    %19 = vector.load %arg4[%c2, %c0_16] : memref<3x512xf32, #tpu.memory_space<vmem>>, vector<1x512xf32>
    %20 = vector.broadcast %19 : vector<1x512xf32> to vector<16x512xf32>
    %21 = arith.addf %18, %20 : vector<16x512xf32>
    %cst_17 = arith.constant 0.000000e+00 : f32
    %22 = vector.broadcast %cst_17 : f32 to vector<16x512xf32>
    %23 = arith.maximumf %21, %22 : vector<16x512xf32>
    %24 = arith.addf %7, %23 : vector<16x512xf32>
    %c0_18 = arith.constant 0 : index
    %c0_19 = arith.constant 0 : index
    %25 = vector.load %arg3[%c0_18, %c0_19] : memref<1x512xf32, #tpu.memory_space<vmem>>, vector<1x512xf32>
    %26 = vector.broadcast %25 : vector<1x512xf32> to vector<16x512xf32>
    %27 = arith.mulf %24, %26 : vector<16x512xf32>
    %cst_20 = arith.constant dense<0.000000e+00> : vector<16xf32>
    %28 = vector.multi_reduction <add>, %27, %cst_20 [1] : vector<16x512xf32> to vector<16xf32>
    %29 = vector.shape_cast %28 : vector<16xf32> to vector<16x1xf32>
    %c0_21 = arith.constant 0 : index
    %c0_22 = arith.constant 0 : index
    %30 = vector.load %arg5[%c0_21, %c0_22] : memref<1x1xf32, #tpu.memory_space<vmem>>, vector<1x1xf32>
    %31 = vector.broadcast %30 : vector<1x1xf32> to vector<16x1xf32>
    %32 = arith.addf %29, %31 : vector<16x1xf32>
    %cst_23 = arith.constant 0.000000e+00 : f32
    %33 = vector.broadcast %cst_23 : f32 to vector<16x1xf32>
    %34 = arith.subf %33, %32 : vector<16x1xf32>
    %35 = math.exp %34 : vector<16x1xf32>
    %cst_24 = arith.constant 1.000000e+00 : f32
    %36 = vector.broadcast %cst_24 : f32 to vector<16x1xf32>
    %37 = arith.addf %36, %35 : vector<16x1xf32>
    %cst_25 = arith.constant 1.000000e+00 : f32
    %38 = vector.broadcast %cst_25 : f32 to vector<16x1xf32>
    %39 = arith.divf %38, %37 : vector<16x1xf32>
    %c0_26 = arith.constant 0 : index
    %c0_27 = arith.constant 0 : index
    %40 = vector.load %arg6[%c0_26, %c0_27] : memref<16x1xf32, #tpu.memory_space<vmem>>, vector<16x1xf32>
    tpu.vector_store %arg6[%c0_26, %c0_27], %39 {strides = array<i32>} : memref<16x1xf32, #tpu.memory_space<vmem>>, vector<16x1xf32>,
    return
  }
}

</mosaic_0001>

<llo_original>
// kernel: tpu_custom_call.1
$region0: #{tpu_custom_call.1}
  #allocation0 [shape = 'u32[]', space=smem, size = 0x4, offset = 0x4, fixed_abs, tag = 'smem constant byte address 0x4 - core index']
  #allocation1 [shape = 'u32[72,128]{1,0:T(1,128)}', space=vmem, size = 0x9000, scoped, tag = 'internal scratch']
  #allocation2 [shape = 'f32[1,1]{1,0:T(1,128)S(1)}', space=vmem, size = 0x200, scoped, tag = 'scoped memory for tpu_custom_call.1']
  %s0 = inlined_call_operand.hbm [shape: f32[16,69], index: 0, kind: input, shape index: {}]
  %s1 = inlined_call_operand.hbm [shape: f32[69,512], index: 1, kind: input, shape index: {}]
  %s2 = inlined_call_operand.hbm [shape: f32[2,512,512], index: 2, kind: input, shape index: {}]
  %s3 = inlined_call_operand.hbm [shape: f32[1,512], index: 3, kind: input, shape index: {}]
  %s4 = inlined_call_operand.hbm [shape: f32[3,512], index: 4, kind: input, shape index: {}]
  %s5 = inlined_call_operand.<no memory space> [shape: f32[1,1], index: 5, kind: input, shape index: {}]
  %s6 = inlined_call_operand.vmem [shape: f32[16,1], index: 6, kind: output, shape index: {}]
  %s7 = sld [smem:[#allocation0]]
  $region54: #{tpu_custom_call.1} parent=0
    _
  %s9 = ssub.s32 1, %s7
  %s10 = scalar_select 0, %s9, %s7
  %v11 = vstv %s5
  %12 = vst [vmem:[#allocation2] sm:$0x1] %v11
  $region1: #{tpu_custom_call.1} parent=0
    #allocation3 [shape = 'u8[8192]{0}', space=vmem, size = 0x2000, scoped, tag = 'input window, operand 0, single buffered']
    #allocation4 [shape = 's32[1]{0}', space=sflag, size = 0x4, scoped, tag = 'scoped memory for tpu_custom_call.1']
    #allocation5 [shape = 'u8[147456]{0}', space=vmem, size = 0x24000, scoped, tag = 'input window, operand 1, single buffered']
    #allocation6 [shape = 's32[1]{0}', space=sflag, size = 0x4, scoped, tag = 'scoped memory for tpu_custom_call.1']
    #allocation7 [shape = 'u8[2097152]{0}', space=vmem, size = 0x200000, scoped, tag = 'input window, operand 2, single buffered']
    #allocation8 [shape = 'u8[2048]{0}', space=vmem, size = 0x800, scoped, tag = 'input window, operand 3, single buffered']
    #allocation9 [shape = 's32[1]{0}', space=sflag, size = 0x4, scoped, tag = 'scoped memory for tpu_custom_call.1']
    #allocation10 [shape = 'u8[8192]{0}', space=vmem, size = 0x2000, scoped, tag = 'input window, operand 4, single buffered']
    %13 = vsyncpa [#allocation4], 0
    %14 = vsyncpa [#allocation6], 0
    %15 = vsyncpa [#allocation9], 0
    // Predicated region
    $region2: #{tpu_custom_call.1} parent=1 // pred_check
      _
    $region3: #{tpu_custom_call.1} parent=1 // pred_check_branch
      %17 = sbr.rel (0) target = $region5
    $region4: #{tpu_custom_call.1} parent=1 // pred_region
      %19 = vsyncadd [#allocation4], 0
      %s20 = sshll.u32 %s0, 4
      %s21 = int_to_ptr.hbm [resolvable:$true] %s20
      %s22 = sshll.u32 [#allocation3], 4
      %s23 = int_to_ptr.vmem [resolvable:$true] %s22
      %28 = dma.hbm_to_vmem [thread:$0]  %s21, 256, %s23, [#allocation4], 128, 128, 8
    $region5: #{tpu_custom_call.1} parent=1 // pred_fallthru
      _
    // Predicated region
    $region6: #{tpu_custom_call.1} parent=1 // pred_check
      _
    $region7: #{tpu_custom_call.1} parent=1 // pred_check_branch
      %30 = sbr.rel (0) target = $region9
    $region8: #{tpu_custom_call.1} parent=1 // pred_region
      %32 = vsyncadd [#allocation6], 0
      %s33 = sshll.u32 %s1, 4
      %s34 = int_to_ptr.hbm [resolvable:$true] %s33
      %s35 = sshll.u32 [#allocation5], 4
      %s36 = int_to_ptr.vmem [resolvable:$true] %s35
      %41 = dma.hbm_to_vmem [thread:$0]  %s34, 4608, %s36, [#allocation6], 512, 512, 32
    $region9: #{tpu_custom_call.1} parent=1 // pred_fallthru
      _
    // Predicated region
    $region10: #{tpu_custom_call.1} parent=1 // pred_check
      _
    $region11: #{tpu_custom_call.1} parent=1 // pred_check_branch
      %43 = sbr.rel (0) target = $region13
    $region12: #{tpu_custom_call.1} parent=1 // pred_region
      %45 = vsyncadd [#allocation6], 0
      %s46 = sshll.u32 %s2, 4
      %s47 = int_to_ptr.hbm [resolvable:$true] %s46
      %s48 = sshll.u32 [#allocation7], 4
      %s49 = int_to_ptr.vmem [resolvable:$true] %s48
      %54 = dma.hbm_to_vmem [thread:$0]  %s47, 65536, %s49, [#allocation6], 512, 512, 32
    $region13: #{tpu_custom_call.1} parent=1 // pred_fallthru
      _
    // Predicated region
    $region14: #{tpu_custom_call.1} parent=1 // pred_check
      _
    $region15: #{tpu_custom_call.1} parent=1 // pred_check_branch
      %56 = sbr.rel (0) target = $region17
    $region16: #{tpu_custom_call.1} parent=1 // pred_region
      %58 = vsyncadd [#allocation9], 0
      %s60 = sshll.u32 %s3, 4
      %s61 = int_to_ptr.hbm [resolvable:$true] %s60
      %s62 = sshll.u32 [#allocation8], 4
      %s63 = int_to_ptr.vmem [resolvable:$true] %s62
      %65 = dma.hbm_to_vmem [thread:$0]  %s61, 64, %s63, [#allocation9]
    $region17: #{tpu_custom_call.1} parent=1 // pred_fallthru
      _
    // Predicated region
    $region18: #{tpu_custom_call.1} parent=1 // pred_check
      _
    $region19: #{tpu_custom_call.1} parent=1 // pred_check_branch
      %67 = sbr.rel (0) target = $region21
    $region20: #{tpu_custom_call.1} parent=1 // pred_region
      %69 = vsyncadd [#allocation9], 0
      %s71 = sshll.u32 %s4, 4
      %s72 = int_to_ptr.hbm [resolvable:$true] %s71
      %s73 = sshll.u32 [#allocation10], 4
      %s74 = int_to_ptr.vmem [resolvable:$true] %s73
      %76 = dma.hbm_to_vmem [thread:$0]  %s72, 256, %s74, [#allocation9]
    $region21: #{tpu_custom_call.1} parent=1 // pred_fallthru
      _
    // Predicated region
    $region22: #{tpu_custom_call.1} parent=1 // pred_check
      _
    $region23: #{tpu_custom_call.1} parent=1 // pred_check_branch
      %78 = sbr.rel (0) target = $region25
    $region24: #{tpu_custom_call.1} parent=1 // pred_region
      _
    $region25: #{tpu_custom_call.1} parent=1 // pred_fallthru
      _
    // Predicated region
    $region26: #{tpu_custom_call.1} parent=1 // pred_check
      _
    $region27: #{tpu_custom_call.1} parent=1 // pred_check_branch
      %80 = sbr.rel (0) target = $region29
    $region28: #{tpu_custom_call.1} parent=1 // pred_region
      %82 = dma.done [#allocation4], 256
    $region29: #{tpu_custom_call.1} parent=1 // pred_fallthru
      _
    // Predicated region
    $region30: #{tpu_custom_call.1} parent=1 // pred_check
      _
    $region31: #{tpu_custom_call.1} parent=1 // pred_check_branch
      %84 = sbr.rel (0) target = $region33
    $region32: #{tpu_custom_call.1} parent=1 // pred_region
      %86 = dma.done [#allocation6], 4608
    $region33: #{tpu_custom_call.1} parent=1 // pred_fallthru
      _
    // Predicated region
    $region34: #{tpu_custom_call.1} parent=1 // pred_check
      _
    $region35: #{tpu_custom_call.1} parent=1 // pred_check_branch
      %88 = sbr.rel (0) target = $region37
    $region36: #{tpu_custom_call.1} parent=1 // pred_region
      %90 = dma.done [#allocation6], 65536
    $region37: #{tpu_custom_call.1} parent=1 // pred_fallthru
      _
    // Predicated region
    $region38: #{tpu_custom_call.1} parent=1 // pred_check
      _
    $region39: #{tpu_custom_call.1} parent=1 // pred_check_branch
      %92 = sbr.rel (0) target = $region41
    $region40: #{tpu_custom_call.1} parent=1 // pred_region
      %94 = dma.done [#allocation9], 64
    $region41: #{tpu_custom_call.1} parent=1 // pred_fallthru
      _
    // Predicated region
    $region42: #{tpu_custom_call.1} parent=1 // pred_check
      _
    $region43: #{tpu_custom_call.1} parent=1 // pred_check_branch
      %96 = sbr.rel (0) target = $region45
    $region44: #{tpu_custom_call.1} parent=1 // pred_region
      %98 = dma.done [#allocation9], 256
    $region45: #{tpu_custom_call.1} parent=1 // pred_fallthru
      _
    %v99 = vld [vmem:[#allocation3] sm:$0xff]
    %v100 = vld [vmem:[#allocation3 + $0x8] sm:$0xff]
    %v101 = vld [vmem:[#allocation5] sm:$0xff]
    %v102 = vld [vmem:[#allocation5 + $0x8] sm:$0xff]
    %v103 = vld [vmem:[#allocation5 + $0x10] sm:$0xff]
    %v104 = vld [vmem:[#allocation5 + $0x18] sm:$0xff]
    %v105 = vld [vmem:[#allocation5 + $0x20] sm:$0xff]
    %v106 = vld [vmem:[#allocation5 + $0x28] sm:$0xff]
    %v107 = vld [vmem:[#allocation5 + $0x30] sm:$0xff]
    %v108 = vld [vmem:[#allocation5 + $0x38] sm:$0xff]
    %v109 = vld [vmem:[#allocation5 + $0x40] sm:$0xff]
    %v110 = vld [vmem:[#allocation5 + $0x48] sm:$0xff]
    %v111 = vld [vmem:[#allocation5 + $0x50] sm:$0xff]
    %v112 = vld [vmem:[#allocation5 + $0x58] sm:$0xff]
    %v113 = vld [vmem:[#allocation5 + $0x60] sm:$0xff]
    %v114 = vld [vmem:[#allocation5 + $0x68] sm:$0xff]
    %v115 = vld [vmem:[#allocation5 + $0x70] sm:$0xff]
    %v116 = vld [vmem:[#allocation5 + $0x78] sm:$0xff]
    %v117 = vld [vmem:[#allocation5 + $0x80] sm:$0xff]
    %v118 = vld [vmem:[#allocation5 + $0x88] sm:$0xff]
    %v119 = vld [vmem:[#allocation5 + $0x90] sm:$0xff]
    %v120 = vld [vmem:[#allocation5 + $0x98] sm:$0xff]
    %v121 = vld [vmem:[#allocation5 + $0xa0] sm:$0xff]
    %v122 = vld [vmem:[#allocation5 + $0xa8] sm:$0xff]
    %v123 = vld [vmem:[#allocation5 + $0xb0] sm:$0xff]
    %v124 = vld [vmem:[#allocation5 + $0xb8] sm:$0xff]
    %v125 = vld [vmem:[#allocation5 + $0xc0] sm:$0xff]
    %v126 = vld [vmem:[#allocation5 + $0xc8] sm:$0xff]
    %v127 = vld [vmem:[#allocation5 + $0xd0] sm:$0xff]
    %v128 = vld [vmem:[#allocation5 + $0xd8] sm:$0xff]
    %v129 = vld [vmem:[#allocation5 + $0xe0] sm:$0xff]
    %v130 = vld [vmem:[#allocation5 + $0xe8] sm:$0xff]
    %v131 = vld [vmem:[#allocation5 + $0xf0] sm:$0xff]
    %v132 = vld [vmem:[#allocation5 + $0xf8] sm:$0xff]
    %v133 = vld [vmem:[#allocation5 + $0x100] sm:$0x1f]
    %v134 = vld [vmem:[#allocation5 + $0x108] sm:$0x1f]
    %v135 = vld [vmem:[#allocation5 + $0x110] sm:$0x1f]
    %v136 = vld [vmem:[#allocation5 + $0x118] sm:$0x1f]
    %v137 = vld [vmem:[#allocation10] ss:$4 sm:$0xf]
    %v139 = vperm.slane %v137, 0
    %v140 = vperm.slane %v137, 1
    %v141 = vperm.slane %v137, 2
    %v142 = vperm.slane %v137, 3
    %vm147 = vcmask 564224
    %v149 = vsel %vm147, %v99, 0
    %v152 = vsel %vm147, %v100, 0
    %vm154 = vcmask 1044480
    %v156 = vsel %vm154, %v133, 0
    %v159 = vsel %vm154, %v134, 0
    %v162 = vsel %vm154, %v135, 0
    %v165 = vsel %vm154, %v136, 0
    %167 = vmatpush.msra.mxu0 0.0
    %168 = vmatpush.msra.mxu0 0.0
    %169 = vmatpush.msra.mxu0 0.0
    %170 = vmatpush.msra.mxu0 0.0
    %171 = vmatpush.msra.mxu0 0.0
    %172 = vmatpush.msra.mxu0 0.0
    %173 = vmatpush.msra.mxu0 0.0
    %174 = vmatpush.msra.mxu0 %v156
    %175 = vmatpush.msra.mxu0 %v129
    %176 = vmatpush.msra.mxu0 %v125
    %177 = vmatpush.msra.mxu0 %v121
    %178 = vmatpush.msra.mxu0 %v117
    %179 = vmatpush.msra.mxu0 %v113
    %180 = vmatpush.msra.mxu0 %v109
    %181 = vmatpush.msra.mxu0 %v105
    %182 = vmatpush.msra.mxu0 %v101
    %183 = vmatmul.f32.gmra.mxu0 %v149
    %v184 = vpop.f32.mrf.mxu0
    %v185 = vadd.f32 %v139, %v184
    %186 = vmatmul.f32.gmra.mxu0 %v152
    %v187 = vpop.f32.mrf.mxu0
    %v188 = vadd.f32 %v139, %v187
    %189 = vdwg.mxu0
    %190 = vmatpush.msra.mxu0 0.0
    %191 = vmatpush.msra.mxu0 0.0
    %192 = vmatpush.msra.mxu0 0.0
    %193 = vmatpush.msra.mxu0 0.0
    %194 = vmatpush.msra.mxu0 0.0
    %195 = vmatpush.msra.mxu0 0.0
    %196 = vmatpush.msra.mxu0 0.0
    %197 = vmatpush.msra.mxu0 %v159
    %198 = vmatpush.msra.mxu0 %v130
    %199 = vmatpush.msra.mxu0 %v126
    %200 = vmatpush.msra.mxu0 %v122
    %201 = vmatpush.msra.mxu0 %v118
    %202 = vmatpush.msra.mxu0 %v114
    %203 = vmatpush.msra.mxu0 %v110
    %204 = vmatpush.msra.mxu0 %v106
    %205 = vmatpush.msra.mxu0 %v102
    %206 = vmatmul.f32.gmra.mxu0 %v149
    %v207 = vpop.f32.mrf.mxu0
    %v208 = vadd.f32 %v140, %v207
    %209 = vmatmul.f32.gmra.mxu0 %v152
    %v210 = vpop.f32.mrf.mxu0
    %v211 = vadd.f32 %v140, %v210
    %212 = vdwg.mxu0
    %213 = vmatpush.msra.mxu0 0.0
    %214 = vmatpush.msra.mxu0 0.0
    %215 = vmatpush.msra.mxu0 0.0
    %216 = vmatpush.msra.mxu0 0.0
    %217 = vmatpush.msra.mxu0 0.0
    %218 = vmatpush.msra.mxu0 0.0
    %219 = vmatpush.msra.mxu0 0.0
    %220 = vmatpush.msra.mxu0 %v162
    %221 = vmatpush.msra.mxu0 %v131
    %222 = vmatpush.msra.mxu0 %v127
    %223 = vmatpush.msra.mxu0 %v123
    %224 = vmatpush.msra.mxu0 %v119
    %225 = vmatpush.msra.mxu0 %v115
    %226 = vmatpush.msra.mxu0 %v111
    %227 = vmatpush.msra.mxu0 %v107
    %228 = vmatpush.msra.mxu0 %v103
    %229 = vmatmul.f32.gmra.mxu0 %v149
    %v230 = vpop.f32.mrf.mxu0
    %v231 = vadd.f32 %v141, %v230
    %232 = vmatmul.f32.gmra.mxu0 %v152
    %v233 = vpop.f32.mrf.mxu0
    %v234 = vadd.f32 %v141, %v233
    %235 = vdwg.mxu0
    %236 = vmatpush.msra.mxu0 0.0
    %237 = vmatpush.msra.mxu0 0.0
    %238 = vmatpush.msra.mxu0 0.0
    %239 = vmatpush.msra.mxu0 0.0
    %240 = vmatpush.msra.mxu0 0.0
    %241 = vmatpush.msra.mxu0 0.0
    %242 = vmatpush.msra.mxu0 0.0
    %243 = vmatpush.msra.mxu0 %v165
    %244 = vmatpush.msra.mxu0 %v132
    %245 = vmatpush.msra.mxu0 %v128
    %246 = vmatpush.msra.mxu0 %v124
    %247 = vmatpush.msra.mxu0 %v120
    %248 = vmatpush.msra.mxu0 %v116
    %249 = vmatpush.msra.mxu0 %v112
    %250 = vmatpush.msra.mxu0 %v108
    %251 = vmatpush.msra.mxu0 %v104
    %252 = vmatmul.f32.gmra.mxu0 %v149
    %v253 = vpop.f32.mrf.mxu0
    %v254 = vadd.f32 %v142, %v253
    %255 = vmatmul.f32.gmra.mxu0 %v152
    %v256 = vpop.f32.mrf.mxu0
    %v257 = vadd.f32 %v142, %v256
    %258 = vdwg.mxu0
    %v259 = vmax.f32 %v185, 0.0
    %v260 = vmax.f32 %v208, 0.0
    %v261 = vmax.f32 %v231, 0.0
    %v262 = vmax.f32 %v254, 0.0
    %v263 = vmax.f32 %v188, 0.0
    %v264 = vmax.f32 %v211, 0.0
    %v265 = vmax.f32 %v234, 0.0
    %v266 = vmax.f32 %v257, 0.0
    %v267 = vld [vmem:[#allocation7] sm:$0xff]
    %v268 = vld [vmem:[#allocation7 + $0x8] sm:$0xff]
    %v269 = vld [vmem:[#allocation7 + $0x10] sm:$0xff]
    %v270 = vld [vmem:[#allocation7 + $0x18] sm:$0xff]
    %v271 = vld [vmem:[#allocation7 + $0x20] sm:$0xff]
    %v272 = vld [vmem:[#allocation7 + $0x28] sm:$0xff]
    %v273 = vld [vmem:[#allocation7 + $0x30] sm:$0xff]
    %v274 = vld [vmem:[#allocation7 + $0x38] sm:$0xff]
    %v275 = vld [vmem:[#allocation7 + $0x40] sm:$0xff]
    %v276 = vld [vmem:[#allocation7 + $0x48] sm:$0xff]
    %v277 = vld [vmem:[#allocation7 + $0x50] sm:$0xff]
    %v278 = vld [vmem:[#allocation7 + $0x58] sm:$0xff]
    %v279 = vld [vmem:[#allocation7 + $0x60] sm:$0xff]
    %v280 = vld [vmem:[#allocation7 + $0x68] sm:$0xff]
    %v281 = vld [vmem:[#allocation7 + $0x70] sm:$0xff]
    %v282 = vld [vmem:[#allocation7 + $0x78] sm:$0xff]
    %v283 = vld [vmem:[#allocation7 + $0x80] sm:$0xff]
    %v284 = vld [vmem:[#allocation7 + $0x88] sm:$0xff]
    %v285 = vld [vmem:[#allocation7 + $0x90] sm:$0xff]
    %v286 = vld [vmem:[#allocation7 + $0x98] sm:$0xff]
    %v287 = vld [vmem:[#allocation7 + $0xa0] sm:$0xff]
    %v288 = vld [vmem:[#allocation7 + $0xa8] sm:$0xff]
    %v289 = vld [vmem:[#allocation7 + $0xb0] sm:$0xff]
    %v290 = vld [vmem:[#allocation7 + $0xb8] sm:$0xff]
    %v291 = vld [vmem:[#allocation7 + $0xc0] sm:$0xff]
    %v292 = vld [vmem:[#allocation7 + $0xc8] sm:$0xff]
    %v293 = vld [vmem:[#allocation7 + $0xd0] sm:$0xff]
    %v294 = vld [vmem:[#allocation7 + $0xd8] sm:$0xff]
    %v295 = vld [vmem:[#allocation7 + $0xe0] sm:$0xff]
    %v296 = vld [vmem:[#allocation7 + $0xe8] sm:$0xff]
    %v297 = vld [vmem:[#allocation7 + $0xf0] sm:$0xff]
    %v298 = vld [vmem:[#allocation7 + $0xf8] sm:$0xff]
    %v299 = vld [vmem:[#allocation7 + $0x100] sm:$0xff]
    %v300 = vld [vmem:[#allocation7 + $0x108] sm:$0xff]
    %v301 = vld [vmem:[#allocation7 + $0x110] sm:$0xff]
    %v302 = vld [vmem:[#allocation7 + $0x118] sm:$0xff]
    %v303 = vld [vmem:[#allocation7 + $0x120] sm:$0xff]
    %v304 = vld [vmem:[#allocation7 + $0x128] sm:$0xff]
    %v305 = vld [vmem:[#allocation7 + $0x130] sm:$0xff]
    %v306 = vld [vmem:[#allocation7 + $0x138] sm:$0xff]
    %v307 = vld [vmem:[#allocation7 + $0x140] sm:$0xff]
    %v308 = vld [vmem:[#allocation7 + $0x148] sm:$0xff]
    %v309 = vld [vmem:[#allocation7 + $0x150] sm:$0xff]
    %v310 = vld [vmem:[#allocation7 + $0x158] sm:$0xff]
    %v311 = vld [vmem:[#allocation7 + $0x160] sm:$0xff]
    %v312 = vld [vmem:[#allocation7 + $0x168] sm:$0xff]
    %v313 = vld [vmem:[#allocation7 + $0x170] sm:$0xff]
    %v314 = vld [vmem:[#allocation7 + $0x178] sm:$0xff]
    %v315 = vld [vmem:[#allocation7 + $0x180] sm:$0xff]
    %v316 = vld [vmem:[#allocation7 + $0x188] sm:$0xff]
    %v317 = vld [vmem:[#allocation7 + $0x190] sm:$0xff]
    %v318 = vld [vmem:[#allocation7 + $0x198] sm:$0xff]
    %v319 = vld [vmem:[#allocation7 + $0x1a0] sm:$0xff]
    %v320 = vld [vmem:[#allocation7 + $0x1a8] sm:$0xff]
    %v321 = vld [vmem:[#allocation7 + $0x1b0] sm:$0xff]
    %v322 = vld [vmem:[#allocation7 + $0x1b8] sm:$0xff]
    %v323 = vld [vmem:[#allocation7 + $0x1c0] sm:$0xff]
    %v324 = vld [vmem:[#allocation7 + $0x1c8] sm:$0xff]
    %v325 = vld [vmem:[#allocation7 + $0x1d0] sm:$0xff]
    %v326 = vld [vmem:[#allocation7 + $0x1d8] sm:$0xff]
    %v327 = vld [vmem:[#allocation7 + $0x1e0] sm:$0xff]
    %v328 = vld [vmem:[#allocation7 + $0x1e8] sm:$0xff]
    %v329 = vld [vmem:[#allocation7 + $0x1f0] sm:$0xff]
    %v330 = vld [vmem:[#allocation7 + $0x1f8] sm:$0xff]
    %v331 = vld [vmem:[#allocation7 + $0x200] sm:$0xff]
    %v332 = vld [vmem:[#allocation7 + $0x208] sm:$0xff]
    %v333 = vld [vmem:[#allocation7 + $0x210] sm:$0xff]
    %v334 = vld [vmem:[#allocation7 + $0x218] sm:$0xff]
    %v335 = vld [vmem:[#allocation7 + $0x220] sm:$0xff]
    %v336 = vld [vmem:[#allocation7 + $0x228] sm:$0xff]
    %v337 = vld [vmem:[#allocation7 + $0x230] sm:$0xff]
    %v338 = vld [vmem:[#allocation7 + $0x238] sm:$0xff]
    %v339 = vld [vmem:[#allocation7 + $0x240] sm:$0xff]
    %v340 = vld [vmem:[#allocation7 + $0x248] sm:$0xff]
    %v341 = vld [vmem:[#allocation7 + $0x250] sm:$0xff]
    %v342 = vld [vmem:[#allocation7 + $0x258] sm:$0xff]
    %v343 = vld [vmem:[#allocation7 + $0x260] sm:$0xff]
    %v344 = vld [vmem:[#allocation7 + $0x268] sm:$0xff]
    %v345 = vld [vmem:[#allocation7 + $0x270] sm:$0xff]
    %v346 = vld [vmem:[#allocation7 + $0x278] sm:$0xff]
    %v347 = vld [vmem:[#allocation7 + $0x280] sm:$0xff]
    %v348 = vld [vmem:[#allocation7 + $0x288] sm:$0xff]
    %v349 = vld [vmem:[#allocation7 + $0x290] sm:$0xff]
    %v350 = vld [vmem:[#allocation7 + $0x298] sm:$0xff]
    %v351 = vld [vmem:[#allocation7 + $0x2a0] sm:$0xff]
    %v352 = vld [vmem:[#allocation7 + $0x2a8] sm:$0xff]
    %v353 = vld [vmem:[#allocation7 + $0x2b0] sm:$0xff]
    %v354 = vld [vmem:[#allocation7 + $0x2b8] sm:$0xff]
    %v355 = vld [vmem:[#allocation7 + $0x2c0] sm:$0xff]
    %v356 = vld [vmem:[#allocation7 + $0x2c8] sm:$0xff]
    %v357 = vld [vmem:[#allocation7 + $0x2d0] sm:$0xff]
    %v358 = vld [vmem:[#allocation7 + $0x2d8] sm:$0xff]
    %v359 = vld [vmem:[#allocation7 + $0x2e0] sm:$0xff]
    %v360 = vld [vmem:[#allocation7 + $0x2e8] sm:$0xff]
    %v361 = vld [vmem:[#allocation7 + $0x2f0] sm:$0xff]
    %v362 = vld [vmem:[#allocation7 + $0x2f8] sm:$0xff]
    %v363 = vld [vmem:[#allocation7 + $0x300] sm:$0xff]
    %v364 = vld [vmem:[#allocation7 + $0x308] sm:$0xff]
    %v365 = vld [vmem:[#allocation7 + $0x310] sm:$0xff]
    %v366 = vld [vmem:[#allocation7 + $0x318] sm:$0xff]
    %v367 = vld [vmem:[#allocation7 + $0x320] sm:$0xff]
    %v368 = vld [vmem:[#allocation7 + $0x328] sm:$0xff]
    %v369 = vld [vmem:[#allocation7 + $0x330] sm:$0xff]
    %v370 = vld [vmem:[#allocation7 + $0x338] sm:$0xff]
    %v371 = vld [vmem:[#allocation7 + $0x340] sm:$0xff]
    %v372 = vld [vmem:[#allocation7 + $0x348] sm:$0xff]
    %v373 = vld [vmem:[#allocation7 + $0x350] sm:$0xff]
    %v374 = vld [vmem:[#allocation7 + $0x358] sm:$0xff]
    %v375 = vld [vmem:[#allocation7 + $0x360] sm:$0xff]
    %v376 = vld [vmem:[#allocation7 + $0x368] sm:$0xff]
    %v377 = vld [vmem:[#allocation7 + $0x370] sm:$0xff]
    %v378 = vld [vmem:[#allocation7 + $0x378] sm:$0xff]
    %v379 = vld [vmem:[#allocation7 + $0x380] sm:$0xff]
    %v380 = vld [vmem:[#allocation7 + $0x388] sm:$0xff]
    %v381 = vld [vmem:[#allocation7 + $0x390] sm:$0xff]
    %v382 = vld [vmem:[#allocation7 + $0x398] sm:$0xff]
    %v383 = vld [vmem:[#allocation7 + $0x3a0] sm:$0xff]
    %v384 = vld [vmem:[#allocation7 + $0x3a8] sm:$0xff]
    %v385 = vld [vmem:[#allocation7 + $0x3b0] sm:$0xff]
    %v386 = vld [vmem:[#allocation7 + $0x3b8] sm:$0xff]
    %v387 = vld [vmem:[#allocation7 + $0x3c0] sm:$0xff]
    %v388 = vld [vmem:[#allocation7 + $0x3c8] sm:$0xff]
    %v389 = vld [vmem:[#allocation7 + $0x3d0] sm:$0xff]
    %v390 = vld [vmem:[#allocation7 + $0x3d8] sm:$0xff]
    %v391 = vld [vmem:[#allocation7 + $0x3e0] sm:$0xff]
    %v392 = vld [vmem:[#allocation7 + $0x3e8] sm:$0xff]
    %v393 = vld [vmem:[#allocation7 + $0x3f0] sm:$0xff]
    %v394 = vld [vmem:[#allocation7 + $0x3f8] sm:$0xff]
    %v395 = vld [vmem:[#allocation7 + $0x400] sm:$0xff]
    %v396 = vld [vmem:[#allocation7 + $0x408] sm:$0xff]
    %v397 = vld [vmem:[#allocation7 + $0x410] sm:$0xff]
    %v398 = vld [vmem:[#allocation7 + $0x418] sm:$0xff]
    %v399 = vld [vmem:[#allocation7 + $0x420] sm:$0xff]
    %v400 = vld [vmem:[#allocation7 + $0x428] sm:$0xff]
    %v401 = vld [vmem:[#allocation7 + $0x430] sm:$0xff]
    %v402 = vld [vmem:[#allocation7 + $0x438] sm:$0xff]
    %v403 = vld [vmem:[#allocation7 + $0x440] sm:$0xff]
    %v404 = vld [vmem:[#allocation7 + $0x448] sm:$0xff]
    %v405 = vld [vmem:[#allocation7 + $0x450] sm:$0xff]
    %v406 = vld [vmem:[#allocation7 + $0x458] sm:$0xff]
    %v407 = vld [vmem:[#allocation7 + $0x460] sm:$0xff]
    %v408 = vld [vmem:[#allocation7 + $0x468] sm:$0xff]
    %v409 = vld [vmem:[#allocation7 + $0x470] sm:$0xff]
    %v410 = vld [vmem:[#allocation7 + $0x478] sm:$0xff]
    %v411 = vld [vmem:[#allocation7 + $0x480] sm:$0xff]
    %v412 = vld [vmem:[#allocation7 + $0x488] sm:$0xff]
    %v413 = vld [vmem:[#allocation7 + $0x490] sm:$0xff]
    %v414 = vld [vmem:[#allocation7 + $0x498] sm:$0xff]
    %v415 = vld [vmem:[#allocation7 + $0x4a0] sm:$0xff]
    %v416 = vld [vmem:[#allocation7 + $0x4a8] sm:$0xff]
    %v417 = vld [vmem:[#allocation7 + $0x4b0] sm:$0xff]
    %v418 = vld [vmem:[#allocation7 + $0x4b8] sm:$0xff]
    %v419 = vld [vmem:[#allocation7 + $0x4c0] sm:$0xff]
    %v420 = vld [vmem:[#allocation7 + $0x4c8] sm:$0xff]
    %v421 = vld [vmem:[#allocation7 + $0x4d0] sm:$0xff]
    %v422 = vld [vmem:[#allocation7 + $0x4d8] sm:$0xff]
    %v423 = vld [vmem:[#allocation7 + $0x4e0] sm:$0xff]
    %v424 = vld [vmem:[#allocation7 + $0x4e8] sm:$0xff]
    %v425 = vld [vmem:[#allocation7 + $0x4f0] sm:$0xff]
    %v426 = vld [vmem:[#allocation7 + $0x4f8] sm:$0xff]
    %v427 = vld [vmem:[#allocation7 + $0x500] sm:$0xff]
    %v428 = vld [vmem:[#allocation7 + $0x508] sm:$0xff]
    %v429 = vld [vmem:[#allocation7 + $0x510] sm:$0xff]
    %v430 = vld [vmem:[#allocation7 + $0x518] sm:$0xff]
    %v431 = vld [vmem:[#allocation7 + $0x520] sm:$0xff]
    %v432 = vld [vmem:[#allocation7 + $0x528] sm:$0xff]
    %v433 = vld [vmem:[#allocation7 + $0x530] sm:$0xff]
    %v434 = vld [vmem:[#allocation7 + $0x538] sm:$0xff]
    %v435 = vld [vmem:[#allocation7 + $0x540] sm:$0xff]
    %v436 = vld [vmem:[#allocation7 + $0x548] sm:$0xff]
    %v437 = vld [vmem:[#allocation7 + $0x550] sm:$0xff]
    %v438 = vld [vmem:[#allocation7 + $0x558] sm:$0xff]
    %v439 = vld [vmem:[#allocation7 + $0x560] sm:$0xff]
    %v440 = vld [vmem:[#allocation7 + $0x568] sm:$0xff]
    %v441 = vld [vmem:[#allocation7 + $0x570] sm:$0xff]
    %v442 = vld [vmem:[#allocation7 + $0x578] sm:$0xff]
    %v443 = vld [vmem:[#allocation7 + $0x580] sm:$0xff]
    %v444 = vld [vmem:[#allocation7 + $0x588] sm:$0xff]
    %v445 = vld [vmem:[#allocation7 + $0x590] sm:$0xff]
    %v446 = vld [vmem:[#allocation7 + $0x598] sm:$0xff]
    %v447 = vld [vmem:[#allocation7 + $0x5a0] sm:$0xff]
    %v448 = vld [vmem:[#allocation7 + $0x5a8] sm:$0xff]
    %v449 = vld [vmem:[#allocation7 + $0x5b0] sm:$0xff]
    %v450 = vld [vmem:[#allocation7 + $0x5b8] sm:$0xff]
    %v451 = vld [vmem:[#allocation7 + $0x5c0] sm:$0xff]
    %v452 = vld [vmem:[#allocation7 + $0x5c8] sm:$0xff]
    %v453 = vld [vmem:[#allocation7 + $0x5d0] sm:$0xff]
    %v454 = vld [vmem:[#allocation7 + $0x5d8] sm:$0xff]
    %v455 = vld [vmem:[#allocation7 + $0x5e0] sm:$0xff]
    %v456 = vld [vmem:[#allocation7 + $0x5e8] sm:$0xff]
    %v457 = vld [vmem:[#allocation7 + $0x5f0] sm:$0xff]
    %v458 = vld [vmem:[#allocation7 + $0x5f8] sm:$0xff]
    %v459 = vld [vmem:[#allocation7 + $0x600] sm:$0xff]
    %v460 = vld [vmem:[#allocation7 + $0x608] sm:$0xff]
    %v461 = vld [vmem:[#allocation7 + $0x610] sm:$0xff]
    %v462 = vld [vmem:[#allocation7 + $0x618] sm:$0xff]
    %v463 = vld [vmem:[#allocation7 + $0x620] sm:$0xff]
    %v464 = vld [vmem:[#allocation7 + $0x628] sm:$0xff]
    %v465 = vld [vmem:[#allocation7 + $0x630] sm:$0xff]
    %v466 = vld [vmem:[#allocation7 + $0x638] sm:$0xff]
    %v467 = vld [vmem:[#allocation7 + $0x640] sm:$0xff]
    %v468 = vld [vmem:[#allocation7 + $0x648] sm:$0xff]
    %v469 = vld [vmem:[#allocation7 + $0x650] sm:$0xff]
    %v470 = vld [vmem:[#allocation7 + $0x658] sm:$0xff]
    %v471 = vld [vmem:[#allocation7 + $0x660] sm:$0xff]
    %v472 = vld [vmem:[#allocation7 + $0x668] sm:$0xff]
    %v473 = vld [vmem:[#allocation7 + $0x670] sm:$0xff]
    %v474 = vld [vmem:[#allocation7 + $0x678] sm:$0xff]
    %v475 = vld [vmem:[#allocation7 + $0x680] sm:$0xff]
    %v476 = vld [vmem:[#allocation7 + $0x688] sm:$0xff]
    %v477 = vld [vmem:[#allocation7 + $0x690] sm:$0xff]
    %v478 = vld [vmem:[#allocation7 + $0x698] sm:$0xff]
    %v479 = vld [vmem:[#allocation7 + $0x6a0] sm:$0xff]
    %v480 = vld [vmem:[#allocation7 + $0x6a8] sm:$0xff]
    %v481 = vld [vmem:[#allocation7 + $0x6b0] sm:$0xff]
    %v482 = vld [vmem:[#allocation7 + $0x6b8] sm:$0xff]
    %v483 = vld [vmem:[#allocation7 + $0x6c0] sm:$0xff]
    %v484 = vld [vmem:[#allocation7 + $0x6c8] sm:$0xff]
    %v485 = vld [vmem:[#allocation7 + $0x6d0] sm:$0xff]
    %v486 = vld [vmem:[#allocation7 + $0x6d8] sm:$0xff]
    %v487 = vld [vmem:[#allocation7 + $0x6e0] sm:$0xff]
    %v488 = vld [vmem:[#allocation7 + $0x6e8] sm:$0xff]
    %v489 = vld [vmem:[#allocation7 + $0x6f0] sm:$0xff]
    %v490 = vld [vmem:[#allocation7 + $0x6f8] sm:$0xff]
    %v491 = vld [vmem:[#allocation7 + $0x700] sm:$0xff]
    %v492 = vld [vmem:[#allocation7 + $0x708] sm:$0xff]
    %v493 = vld [vmem:[#allocation7 + $0x710] sm:$0xff]
    %v494 = vld [vmem:[#allocation7 + $0x718] sm:$0xff]
    %v495 = vld [vmem:[#allocation7 + $0x720] sm:$0xff]
    %v496 = vld [vmem:[#allocation7 + $0x728] sm:$0xff]
    %v497 = vld [vmem:[#allocation7 + $0x730] sm:$0xff]
    %v498 = vld [vmem:[#allocation7 + $0x738] sm:$0xff]
    %v499 = vld [vmem:[#allocation7 + $0x740] sm:$0xff]
    %v500 = vld [vmem:[#allocation7 + $0x748] sm:$0xff]
    %v501 = vld [vmem:[#allocation7 + $0x750] sm:$0xff]
    %v502 = vld [vmem:[#allocation7 + $0x758] sm:$0xff]
    %v503 = vld [vmem:[#allocation7 + $0x760] sm:$0xff]
    %v504 = vld [vmem:[#allocation7 + $0x768] sm:$0xff]
    %v505 = vld [vmem:[#allocation7 + $0x770] sm:$0xff]
    %v506 = vld [vmem:[#allocation7 + $0x778] sm:$0xff]
    %v507 = vld [vmem:[#allocation7 + $0x780] sm:$0xff]
    %v508 = vld [vmem:[#allocation7 + $0x788] sm:$0xff]
    %v509 = vld [vmem:[#allocation7 + $0x790] sm:$0xff]
    %v510 = vld [vmem:[#allocation7 + $0x798] sm:$0xff]
    %v511 = vld [vmem:[#allocation7 + $0x7a0] sm:$0xff]
    %v512 = vld [vmem:[#allocation7 + $0x7a8] sm:$0xff]
    %v513 = vld [vmem:[#allocation7 + $0x7b0] sm:$0xff]
    %v514 = vld [vmem:[#allocation7 + $0x7b8] sm:$0xff]
    %v515 = vld [vmem:[#allocation7 + $0x7c0] sm:$0xff]
    %v516 = vld [vmem:[#allocation7 + $0x7c8] sm:$0xff]
    %v517 = vld [vmem:[#allocation7 + $0x7d0] sm:$0xff]
    %v518 = vld [vmem:[#allocation7 + $0x7d8] sm:$0xff]
    %v519 = vld [vmem:[#allocation7 + $0x7e0] sm:$0xff]
    %v520 = vld [vmem:[#allocation7 + $0x7e8] sm:$0xff]
    %v521 = vld [vmem:[#allocation7 + $0x7f0] sm:$0xff]
    %v522 = vld [vmem:[#allocation7 + $0x7f8] sm:$0xff]
    %s523 = scalar_lea.vmem [#allocation10], 1
    %v524 = vld [vmem:[%s523] ss:$4 sm:$0xf]
    %v526 = vperm.slane %v524, 0
    %v527 = vperm.slane %v524, 1
    %v528 = vperm.slane %v524, 2
    %v529 = vperm.slane %v524, 3
    %534 = vmatpush.msra.mxu0 %v327
    %535 = vmatpush.msra.mxu0 %v323
    %536 = vmatpush.msra.mxu0 %v319
    %537 = vmatpush.msra.mxu0 %v315
    %538 = vmatpush.msra.mxu0 %v311
    %539 = vmatpush.msra.mxu0 %v307
    %540 = vmatpush.msra.mxu0 %v303
    %541 = vmatpush.msra.mxu0 %v299
    %542 = vmatpush.msra.mxu0 %v295
    %543 = vmatpush.msra.mxu0 %v291
    %544 = vmatpush.msra.mxu0 %v287
    %545 = vmatpush.msra.mxu0 %v283
    %546 = vmatpush.msra.mxu0 %v279
    %547 = vmatpush.msra.mxu0 %v275
    %548 = vmatpush.msra.mxu0 %v271
    %549 = vmatpush.msra.mxu0 %v267
    %550 = vmatmul.f32.gmra.mxu0 %v259
    %v551 = vpop.f32.mrf.mxu0
    %v552 = vadd.f32 %v526, %v551
    %553 = vmatmul.f32.gmra.mxu0 %v263
    %v554 = vpop.f32.mrf.mxu0
    %v555 = vadd.f32 %v526, %v554
    %556 = vdwg.mxu0
    %557 = vmatpush.msra.mxu0 %v391
    %558 = vmatpush.msra.mxu0 %v387
    %559 = vmatpush.msra.mxu0 %v383
    %560 = vmatpush.msra.mxu0 %v379
    %561 = vmatpush.msra.mxu0 %v375
    %562 = vmatpush.msra.mxu0 %v371
    %563 = vmatpush.msra.mxu0 %v367
    %564 = vmatpush.msra.mxu0 %v363
    %565 = vmatpush.msra.mxu0 %v359
    %566 = vmatpush.msra.mxu0 %v355
    %567 = vmatpush.msra.mxu0 %v351
    %568 = vmatpush.msra.mxu0 %v347
    %569 = vmatpush.msra.mxu0 %v343
    %570 = vmatpush.msra.mxu0 %v339
    %571 = vmatpush.msra.mxu0 %v335
    %572 = vmatpush.msra.mxu0 %v331
    %573 = vmatmul.f32.gmra.mxu0 %v260
    %v574 = vpop.f32.mrf.mxu0
    %v575 = vadd.f32 %v552, %v574
    %576 = vmatmul.f32.gmra.mxu0 %v264
    %v577 = vpop.f32.mrf.mxu0
    %v578 = vadd.f32 %v555, %v577
    %579 = vdwg.mxu0
    %580 = vmatpush.msra.mxu0 %v455
    %581 = vmatpush.msra.mxu0 %v451
    %582 = vmatpush.msra.mxu0 %v447
    %583 = vmatpush.msra.mxu0 %v443
    %584 = vmatpush.msra.mxu0 %v439
    %585 = vmatpush.msra.mxu0 %v435
    %586 = vmatpush.msra.mxu0 %v431
    %587 = vmatpush.msra.mxu0 %v427
    %588 = vmatpush.msra.mxu0 %v423
    %589 = vmatpush.msra.mxu0 %v419
    %590 = vmatpush.msra.mxu0 %v415
    %591 = vmatpush.msra.mxu0 %v411
    %592 = vmatpush.msra.mxu0 %v407
    %593 = vmatpush.msra.mxu0 %v403
    %594 = vmatpush.msra.mxu0 %v399
    %595 = vmatpush.msra.mxu0 %v395
    %596 = vmatmul.f32.gmra.mxu0 %v261
    %v597 = vpop.f32.mrf.mxu0
    %v598 = vadd.f32 %v575, %v597
    %599 = vmatmul.f32.gmra.mxu0 %v265
    %v600 = vpop.f32.mrf.mxu0
    %v601 = vadd.f32 %v578, %v600
    %602 = vdwg.mxu0
    %603 = vmatpush.msra.mxu0 %v519
    %604 = vmatpush.msra.mxu0 %v515
    %605 = vmatpush.msra.mxu0 %v511
    %606 = vmatpush.msra.mxu0 %v507
    %607 = vmatpush.msra.mxu0 %v503
    %608 = vmatpush.msra.mxu0 %v499
    %609 = vmatpush.msra.mxu0 %v495
    %610 = vmatpush.msra.mxu0 %v491
    %611 = vmatpush.msra.mxu0 %v487
    %612 = vmatpush.msra.mxu0 %v483
    %613 = vmatpush.msra.mxu0 %v479
    %614 = vmatpush.msra.mxu0 %v475
    %615 = vmatpush.msra.mxu0 %v471
    %616 = vmatpush.msra.mxu0 %v467
    %617 = vmatpush.msra.mxu0 %v463
    %618 = vmatpush.msra.mxu0 %v459
    %619 = vmatmul.f32.gmra.mxu0 %v262
    %v620 = vpop.f32.mrf.mxu0
    %v621 = vadd.f32 %v598, %v620
    %622 = vmatmul.f32.gmra.mxu0 %v266
    %v623 = vpop.f32.mrf.mxu0
    %v624 = vadd.f32 %v601, %v623
    %625 = vdwg.mxu0
    %626 = vmatpush.msra.mxu0 %v328
    %627 = vmatpush.msra.mxu0 %v324
    %628 = vmatpush.msra.mxu0 %v320
    %629 = vmatpush.msra.mxu0 %v316
    %630 = vmatpush.msra.mxu0 %v312
    %631 = vmatpush.msra.mxu0 %v308
    %632 = vmatpush.msra.mxu0 %v304
    %633 = vmatpush.msra.mxu0 %v300
    %634 = vmatpush.msra.mxu0 %v296
    %635 = vmatpush.msra.mxu0 %v292
    %636 = vmatpush.msra.mxu0 %v288
    %637 = vmatpush.msra.mxu0 %v284
    %638 = vmatpush.msra.mxu0 %v280
    %639 = vmatpush.msra.mxu0 %v276
    %640 = vmatpush.msra.mxu0 %v272
    %641 = vmatpush.msra.mxu0 %v268
    %642 = vmatmul.f32.gmra.mxu0 %v259
    %v643 = vpop.f32.mrf.mxu0
    %v644 = vadd.f32 %v527, %v643
    %645 = vmatmul.f32.gmra.mxu0 %v263
    %v646 = vpop.f32.mrf.mxu0
    %v647 = vadd.f32 %v527, %v646
    %648 = vdwg.mxu0
    %649 = vmatpush.msra.mxu0 %v392
    %650 = vmatpush.msra.mxu0 %v388
    %651 = vmatpush.msra.mxu0 %v384
    %652 = vmatpush.msra.mxu0 %v380
    %653 = vmatpush.msra.mxu0 %v376
    %654 = vmatpush.msra.mxu0 %v372
    %655 = vmatpush.msra.mxu0 %v368
    %656 = vmatpush.msra.mxu0 %v364
    %657 = vmatpush.msra.mxu0 %v360
    %658 = vmatpush.msra.mxu0 %v356
    %659 = vmatpush.msra.mxu0 %v352
    %660 = vmatpush.msra.mxu0 %v348
    %661 = vmatpush.msra.mxu0 %v344
    %662 = vmatpush.msra.mxu0 %v340
    %663 = vmatpush.msra.mxu0 %v336
    %664 = vmatpush.msra.mxu0 %v332
    %665 = vmatmul.f32.gmra.mxu0 %v260
    %v666 = vpop.f32.mrf.mxu0
    %v667 = vadd.f32 %v644, %v666
    %668 = vmatmul.f32.gmra.mxu0 %v264
    %v669 = vpop.f32.mrf.mxu0
    %v670 = vadd.f32 %v647, %v669
    %671 = vdwg.mxu0
    %672 = vmatpush.msra.mxu0 %v456
    %673 = vmatpush.msra.mxu0 %v452
    %674 = vmatpush.msra.mxu0 %v448
    %675 = vmatpush.msra.mxu0 %v444
    %676 = vmatpush.msra.mxu0 %v440
    %677 = vmatpush.msra.mxu0 %v436
    %678 = vmatpush.msra.mxu0 %v432
    %679 = vmatpush.msra.mxu0 %v428
    %680 = vmatpush.msra.mxu0 %v424
    %681 = vmatpush.msra.mxu0 %v420
    %682 = vmatpush.msra.mxu0 %v416
    %683 = vmatpush.msra.mxu0 %v412
    %684 = vmatpush.msra.mxu0 %v408
    %685 = vmatpush.msra.mxu0 %v404
    %686 = vmatpush.msra.mxu0 %v400
    %687 = vmatpush.msra.mxu0 %v396
    %688 = vmatmul.f32.gmra.mxu0 %v261
    %v689 = vpop.f32.mrf.mxu0
    %v690 = vadd.f32 %v667, %v689
    %691 = vmatmul.f32.gmra.mxu0 %v265
    %v692 = vpop.f32.mrf.mxu0
    %v693 = vadd.f32 %v670, %v692
    %694 = vdwg.mxu0
    %695 = vmatpush.msra.mxu0 %v520
    %696 = vmatpush.msra.mxu0 %v516
    %697 = vmatpush.msra.mxu0 %v512
    %698 = vmatpush.msra.mxu0 %v508
    %699 = vmatpush.msra.mxu0 %v504
    %700 = vmatpush.msra.mxu0 %v500
    %701 = vmatpush.msra.mxu0 %v496
    %702 = vmatpush.msra.mxu0 %v492
    %703 = vmatpush.msra.mxu0 %v488
    %704 = vmatpush.msra.mxu0 %v484
    %705 = vmatpush.msra.mxu0 %v480
    %706 = vmatpush.msra.mxu0 %v476
    %707 = vmatpush.msra.mxu0 %v472
    %708 = vmatpush.msra.mxu0 %v468
    %709 = vmatpush.msra.mxu0 %v464
    %710 = vmatpush.msra.mxu0 %v460
    %711 = vmatmul.f32.gmra.mxu0 %v262
    %v712 = vpop.f32.mrf.mxu0
    %v713 = vadd.f32 %v690, %v712
    %714 = vmatmul.f32.gmra.mxu0 %v266
    %v715 = vpop.f32.mrf.mxu0
    %v716 = vadd.f32 %v693, %v715
    %717 = vdwg.mxu0
    %718 = vmatpush.msra.mxu0 %v329
    %719 = vmatpush.msra.mxu0 %v325
    %720 = vmatpush.msra.mxu0 %v321
    %721 = vmatpush.msra.mxu0 %v317
    %722 = vmatpush.msra.mxu0 %v313
    %723 = vmatpush.msra.mxu0 %v309
    %724 = vmatpush.msra.mxu0 %v305
    %725 = vmatpush.msra.mxu0 %v301
    %726 = vmatpush.msra.mxu0 %v297
    %727 = vmatpush.msra.mxu0 %v293
    %728 = vmatpush.msra.mxu0 %v289
    %729 = vmatpush.msra.mxu0 %v285
    %730 = vmatpush.msra.mxu0 %v281
    %731 = vmatpush.msra.mxu0 %v277
    %732 = vmatpush.msra.mxu0 %v273
    %733 = vmatpush.msra.mxu0 %v269
    %734 = vmatmul.f32.gmra.mxu0 %v259
    %v735 = vpop.f32.mrf.mxu0
    %v736 = vadd.f32 %v528, %v735
    %737 = vmatmul.f32.gmra.mxu0 %v263
    %v738 = vpop.f32.mrf.mxu0
    %v739 = vadd.f32 %v528, %v738
    %740 = vdwg.mxu0
    %741 = vmatpush.msra.mxu0 %v393
    %742 = vmatpush.msra.mxu0 %v389
    %743 = vmatpush.msra.mxu0 %v385
    %744 = vmatpush.msra.mxu0 %v381
    %745 = vmatpush.msra.mxu0 %v377
    %746 = vmatpush.msra.mxu0 %v373
    %747 = vmatpush.msra.mxu0 %v369
    %748 = vmatpush.msra.mxu0 %v365
    %749 = vmatpush.msra.mxu0 %v361
    %750 = vmatpush.msra.mxu0 %v357
    %751 = vmatpush.msra.mxu0 %v353
    %752 = vmatpush.msra.mxu0 %v349
    %753 = vmatpush.msra.mxu0 %v345
    %754 = vmatpush.msra.mxu0 %v341
    %755 = vmatpush.msra.mxu0 %v337
    %756 = vmatpush.msra.mxu0 %v333
    %757 = vmatmul.f32.gmra.mxu0 %v260
    %v758 = vpop.f32.mrf.mxu0
    %v759 = vadd.f32 %v736, %v758
    %760 = vmatmul.f32.gmra.mxu0 %v264
    %v761 = vpop.f32.mrf.mxu0
    %v762 = vadd.f32 %v739, %v761
    %763 = vdwg.mxu0
    %764 = vmatpush.msra.mxu0 %v457
    %765 = vmatpush.msra.mxu0 %v453
    %766 = vmatpush.msra.mxu0 %v449
    %767 = vmatpush.msra.mxu0 %v445
    %768 = vmatpush.msra.mxu0 %v441
    %769 = vmatpush.msra.mxu0 %v437
    %770 = vmatpush.msra.mxu0 %v433
    %771 = vmatpush.msra.mxu0 %v429
    %772 = vmatpush.msra.mxu0 %v425
    %773 = vmatpush.msra.mxu0 %v421
    %774 = vmatpush.msra.mxu0 %v417
    %775 = vmatpush.msra.mxu0 %v413
    %776 = vmatpush.msra.mxu0 %v409
    %777 = vmatpush.msra.mxu0 %v405
    %778 = vmatpush.msra.mxu0 %v401
    %779 = vmatpush.msra.mxu0 %v397
    %780 = vmatmul.f32.gmra.mxu0 %v261
    %v781 = vpop.f32.mrf.mxu0
    %v782 = vadd.f32 %v759, %v781
    %783 = vmatmul.f32.gmra.mxu0 %v265
    %v784 = vpop.f32.mrf.mxu0
    %v785 = vadd.f32 %v762, %v784
    %786 = vdwg.mxu0
    %787 = vmatpush.msra.mxu0 %v521
    %788 = vmatpush.msra.mxu0 %v517
    %789 = vmatpush.msra.mxu0 %v513
    %790 = vmatpush.msra.mxu0 %v509
    %791 = vmatpush.msra.mxu0 %v505
    %792 = vmatpush.msra.mxu0 %v501
    %793 = vmatpush.msra.mxu0 %v497
    %794 = vmatpush.msra.mxu0 %v493
    %795 = vmatpush.msra.mxu0 %v489
    %796 = vmatpush.msra.mxu0 %v485
    %797 = vmatpush.msra.mxu0 %v481
    %798 = vmatpush.msra.mxu0 %v477
    %799 = vmatpush.msra.mxu0 %v473
    %800 = vmatpush.msra.mxu0 %v469
    %801 = vmatpush.msra.mxu0 %v465
    %802 = vmatpush.msra.mxu0 %v461
    %803 = vmatmul.f32.gmra.mxu0 %v262
    %v804 = vpop.f32.mrf.mxu0
    %v805 = vadd.f32 %v782, %v804
    %806 = vmatmul.f32.gmra.mxu0 %v266
    %v807 = vpop.f32.mrf.mxu0
    %v808 = vadd.f32 %v785, %v807
    %809 = vdwg.mxu0
    %810 = vmatpush.msra.mxu0 %v330
    %811 = vmatpush.msra.mxu0 %v326
    %812 = vmatpush.msra.mxu0 %v322
    %813 = vmatpush.msra.mxu0 %v318
    %814 = vmatpush.msra.mxu0 %v314
    %815 = vmatpush.msra.mxu0 %v310
    %816 = vmatpush.msra.mxu0 %v306
    %817 = vmatpush.msra.mxu0 %v302
    %818 = vmatpush.msra.mxu0 %v298
    %819 = vmatpush.msra.mxu0 %v294
    %820 = vmatpush.msra.mxu0 %v290
    %821 = vmatpush.msra.mxu0 %v286
    %822 = vmatpush.msra.mxu0 %v282
    %823 = vmatpush.msra.mxu0 %v278
    %824 = vmatpush.msra.mxu0 %v274
    %825 = vmatpush.msra.mxu0 %v270
    %826 = vmatmul.f32.gmra.mxu0 %v259
    %v827 = vpop.f32.mrf.mxu0
    %v828 = vadd.f32 %v529, %v827
    %829 = vmatmul.f32.gmra.mxu0 %v263
    %v830 = vpop.f32.mrf.mxu0
    %v831 = vadd.f32 %v529, %v830
    %832 = vdwg.mxu0
    %833 = vmatpush.msra.mxu0 %v394
    %834 = vmatpush.msra.mxu0 %v390
    %835 = vmatpush.msra.mxu0 %v386
    %836 = vmatpush.msra.mxu0 %v382
    %837 = vmatpush.msra.mxu0 %v378
    %838 = vmatpush.msra.mxu0 %v374
    %839 = vmatpush.msra.mxu0 %v370
    %840 = vmatpush.msra.mxu0 %v366
    %841 = vmatpush.msra.mxu0 %v362
    %842 = vmatpush.msra.mxu0 %v358
    %843 = vmatpush.msra.mxu0 %v354
    %844 = vmatpush.msra.mxu0 %v350
    %845 = vmatpush.msra.mxu0 %v346
    %846 = vmatpush.msra.mxu0 %v342
    %847 = vmatpush.msra.mxu0 %v338
    %848 = vmatpush.msra.mxu0 %v334
    %849 = vmatmul.f32.gmra.mxu0 %v260
    %v850 = vpop.f32.mrf.mxu0
    %v851 = vadd.f32 %v828, %v850
    %852 = vmatmul.f32.gmra.mxu0 %v264
    %v853 = vpop.f32.mrf.mxu0
    %v854 = vadd.f32 %v831, %v853
    %855 = vdwg.mxu0
    %856 = vmatpush.msra.mxu0 %v458
    %857 = vmatpush.msra.mxu0 %v454
    %858 = vmatpush.msra.mxu0 %v450
    %859 = vmatpush.msra.mxu0 %v446
    %860 = vmatpush.msra.mxu0 %v442
    %861 = vmatpush.msra.mxu0 %v438
    %862 = vmatpush.msra.mxu0 %v434
    %863 = vmatpush.msra.mxu0 %v430
    %864 = vmatpush.msra.mxu0 %v426
    %865 = vmatpush.msra.mxu0 %v422
    %866 = vmatpush.msra.mxu0 %v418
    %867 = vmatpush.msra.mxu0 %v414
    %868 = vmatpush.msra.mxu0 %v410
    %869 = vmatpush.msra.mxu0 %v406
    %870 = vmatpush.msra.mxu0 %v402
    %871 = vmatpush.msra.mxu0 %v398
    %872 = vmatmul.f32.gmra.mxu0 %v261
    %v873 = vpop.f32.mrf.mxu0
    %v874 = vadd.f32 %v851, %v873
    %875 = vmatmul.f32.gmra.mxu0 %v265
    %v876 = vpop.f32.mrf.mxu0
    %v877 = vadd.f32 %v854, %v876
    %878 = vdwg.mxu0
    %879 = vmatpush.msra.mxu0 %v522
    %880 = vmatpush.msra.mxu0 %v518
    %881 = vmatpush.msra.mxu0 %v514
    %882 = vmatpush.msra.mxu0 %v510
    %883 = vmatpush.msra.mxu0 %v506
    %884 = vmatpush.msra.mxu0 %v502
    %885 = vmatpush.msra.mxu0 %v498
    %886 = vmatpush.msra.mxu0 %v494
    %887 = vmatpush.msra.mxu0 %v490
    %888 = vmatpush.msra.mxu0 %v486
    %889 = vmatpush.msra.mxu0 %v482
    %890 = vmatpush.msra.mxu0 %v478
    %891 = vmatpush.msra.mxu0 %v474
    %892 = vmatpush.msra.mxu0 %v470
    %893 = vmatpush.msra.mxu0 %v466
    %894 = vmatpush.msra.mxu0 %v462
    %895 = vmatmul.f32.gmra.mxu0 %v262
    %v896 = vpop.f32.mrf.mxu0
    %v897 = vadd.f32 %v874, %v896
    %898 = vmatmul.f32.gmra.mxu0 %v266
    %v899 = vpop.f32.mrf.mxu0
    %v900 = vadd.f32 %v877, %v899
    %901 = vdwg.mxu0
    %v902 = vmax.f32 %v621, 0.0
    %v903 = vmax.f32 %v713, 0.0
    %v904 = vmax.f32 %v805, 0.0
    %v905 = vmax.f32 %v897, 0.0
    %v906 = vmax.f32 %v624, 0.0
    %v907 = vmax.f32 %v716, 0.0
    %v908 = vmax.f32 %v808, 0.0
    %v909 = vmax.f32 %v900, 0.0
    %s910 = scalar_lea.vmem [#allocation7], 2048
    %v911 = vld [vmem:[%s910] sm:$0xff]
    %v912 = vld [vmem:[%s910 + $0x8] sm:$0xff]
    %v913 = vld [vmem:[%s910 + $0x10] sm:$0xff]
    %v914 = vld [vmem:[%s910 + $0x18] sm:$0xff]
    %v915 = vld [vmem:[%s910 + $0x20] sm:$0xff]
    %v916 = vld [vmem:[%s910 + $0x28] sm:$0xff]
    %v917 = vld [vmem:[%s910 + $0x30] sm:$0xff]
    %v918 = vld [vmem:[%s910 + $0x38] sm:$0xff]
    %v919 = vld [vmem:[%s910 + $0x40] sm:$0xff]
    %v920 = vld [vmem:[%s910 + $0x48] sm:$0xff]
    %v921 = vld [vmem:[%s910 + $0x50] sm:$0xff]
    %v922 = vld [vmem:[%s910 + $0x58] sm:$0xff]
    %v923 = vld [vmem:[%s910 + $0x60] sm:$0xff]
    %v924 = vld [vmem:[%s910 + $0x68] sm:$0xff]
    %v925 = vld [vmem:[%s910 + $0x70] sm:$0xff]
    %v926 = vld [vmem:[%s910 + $0x78] sm:$0xff]
    %v927 = vld [vmem:[%s910 + $0x80] sm:$0xff]
    %v928 = vld [vmem:[%s910 + $0x88] sm:$0xff]
    %v929 = vld [vmem:[%s910 + $0x90] sm:$0xff]
    %v930 = vld [vmem:[%s910 + $0x98] sm:$0xff]
    %v931 = vld [vmem:[%s910 + $0xa0] sm:$0xff]
    %v932 = vld [vmem:[%s910 + $0xa8] sm:$0xff]
    %v933 = vld [vmem:[%s910 + $0xb0] sm:$0xff]
    %v934 = vld [vmem:[%s910 + $0xb8] sm:$0xff]
    %v935 = vld [vmem:[%s910 + $0xc0] sm:$0xff]
    %v936 = vld [vmem:[%s910 + $0xc8] sm:$0xff]
    %v937 = vld [vmem:[%s910 + $0xd0] sm:$0xff]
    %v938 = vld [vmem:[%s910 + $0xd8] sm:$0xff]
    %v939 = vld [vmem:[%s910 + $0xe0] sm:$0xff]
    %v940 = vld [vmem:[%s910 + $0xe8] sm:$0xff]
    %v941 = vld [vmem:[%s910 + $0xf0] sm:$0xff]
    %v942 = vld [vmem:[%s910 + $0xf8] sm:$0xff]
    %v943 = vld [vmem:[%s910 + $0x100] sm:$0xff]
    %v944 = vld [vmem:[%s910 + $0x108] sm:$0xff]
    %v945 = vld [vmem:[%s910 + $0x110] sm:$0xff]
    %v946 = vld [vmem:[%s910 + $0x118] sm:$0xff]
    %v947 = vld [vmem:[%s910 + $0x120] sm:$0xff]
    %v948 = vld [vmem:[%s910 + $0x128] sm:$0xff]
    %v949 = vld [vmem:[%s910 + $0x130] sm:$0xff]
    %v950 = vld [vmem:[%s910 + $0x138] sm:$0xff]
    %v951 = vld [vmem:[%s910 + $0x140] sm:$0xff]
    %v952 = vld [vmem:[%s910 + $0x148] sm:$0xff]
    %v953 = vld [vmem:[%s910 + $0x150] sm:$0xff]
    %v954 = vld [vmem:[%s910 + $0x158] sm:$0xff]
    %v955 = vld [vmem:[%s910 + $0x160] sm:$0xff]
    %v956 = vld [vmem:[%s910 + $0x168] sm:$0xff]
    %v957 = vld [vmem:[%s910 + $0x170] sm:$0xff]
    %v958 = vld [vmem:[%s910 + $0x178] sm:$0xff]
    %v959 = vld [vmem:[%s910 + $0x180] sm:$0xff]
    %v960 = vld [vmem:[%s910 + $0x188] sm:$0xff]
    %v961 = vld [vmem:[%s910 + $0x190] sm:$0xff]
    %v962 = vld [vmem:[%s910 + $0x198] sm:$0xff]
    %v963 = vld [vmem:[%s910 + $0x1a0] sm:$0xff]
    %v964 = vld [vmem:[%s910 + $0x1a8] sm:$0xff]
    %v965 = vld [vmem:[%s910 + $0x1b0] sm:$0xff]
    %v966 = vld [vmem:[%s910 + $0x1b8] sm:$0xff]
    %v967 = vld [vmem:[%s910 + $0x1c0] sm:$0xff]
    %v968 = vld [vmem:[%s910 + $0x1c8] sm:$0xff]
    %v969 = vld [vmem:[%s910 + $0x1d0] sm:$0xff]
    %v970 = vld [vmem:[%s910 + $0x1d8] sm:$0xff]
    %v971 = vld [vmem:[%s910 + $0x1e0] sm:$0xff]
    %v972 = vld [vmem:[%s910 + $0x1e8] sm:$0xff]
    %v973 = vld [vmem:[%s910 + $0x1f0] sm:$0xff]
    %v974 = vld [vmem:[%s910 + $0x1f8] sm:$0xff]
    %v975 = vld [vmem:[%s910 + $0x200] sm:$0xff]
    %v976 = vld [vmem:[%s910 + $0x208] sm:$0xff]
    %v977 = vld [vmem:[%s910 + $0x210] sm:$0xff]
    %v978 = vld [vmem:[%s910 + $0x218] sm:$0xff]
    %v979 = vld [vmem:[%s910 + $0x220] sm:$0xff]
    %v980 = vld [vmem:[%s910 + $0x228] sm:$0xff]
    %v981 = vld [vmem:[%s910 + $0x230] sm:$0xff]
    %v982 = vld [vmem:[%s910 + $0x238] sm:$0xff]
    %v983 = vld [vmem:[%s910 + $0x240] sm:$0xff]
    %v984 = vld [vmem:[%s910 + $0x248] sm:$0xff]
    %v985 = vld [vmem:[%s910 + $0x250] sm:$0xff]
    %v986 = vld [vmem:[%s910 + $0x258] sm:$0xff]
    %v987 = vld [vmem:[%s910 + $0x260] sm:$0xff]
    %v988 = vld [vmem:[%s910 + $0x268] sm:$0xff]
    %v989 = vld [vmem:[%s910 + $0x270] sm:$0xff]
    %v990 = vld [vmem:[%s910 + $0x278] sm:$0xff]
    %v991 = vld [vmem:[%s910 + $0x280] sm:$0xff]
    %v992 = vld [vmem:[%s910 + $0x288] sm:$0xff]
    %v993 = vld [vmem:[%s910 + $0x290] sm:$0xff]
    %v994 = vld [vmem:[%s910 + $0x298] sm:$0xff]
    %v995 = vld [vmem:[%s910 + $0x2a0] sm:$0xff]
    %v996 = vld [vmem:[%s910 + $0x2a8] sm:$0xff]
    %v997 = vld [vmem:[%s910 + $0x2b0] sm:$0xff]
    %v998 = vld [vmem:[%s910 + $0x2b8] sm:$0xff]
    %v999 = vld [vmem:[%s910 + $0x2c0] sm:$0xff]
    %v1000 = vld [vmem:[%s910 + $0x2c8] sm:$0xff]
    %v1001 = vld [vmem:[%s910 + $0x2d0] sm:$0xff]
    %v1002 = vld [vmem:[%s910 + $0x2d8] sm:$0xff]
    %v1003 = vld [vmem:[%s910 + $0x2e0] sm:$0xff]
    %v1004 = vld [vmem:[%s910 + $0x2e8] sm:$0xff]
    %v1005 = vld [vmem:[%s910 + $0x2f0] sm:$0xff]
    %v1006 = vld [vmem:[%s910 + $0x2f8] sm:$0xff]
    %v1007 = vld [vmem:[%s910 + $0x300] sm:$0xff]
    %v1008 = vld [vmem:[%s910 + $0x308] sm:$0xff]
    %v1009 = vld [vmem:[%s910 + $0x310] sm:$0xff]
    %v1010 = vld [vmem:[%s910 + $0x318] sm:$0xff]
    %v1011 = vld [vmem:[%s910 + $0x320] sm:$0xff]
    %v1012 = vld [vmem:[%s910 + $0x328] sm:$0xff]
    %v1013 = vld [vmem:[%s910 + $0x330] sm:$0xff]
    %v1014 = vld [vmem:[%s910 + $0x338] sm:$0xff]
    %v1015 = vld [vmem:[%s910 + $0x340] sm:$0xff]
    %v1016 = vld [vmem:[%s910 + $0x348] sm:$0xff]
    %v1017 = vld [vmem:[%s910 + $0x350] sm:$0xff]
    %v1018 = vld [vmem:[%s910 + $0x358] sm:$0xff]
    %v1019 = vld [vmem:[%s910 + $0x360] sm:$0xff]
    %v1020 = vld [vmem:[%s910 + $0x368] sm:$0xff]
    %v1021 = vld [vmem:[%s910 + $0x370] sm:$0xff]
    %v1022 = vld [vmem:[%s910 + $0x378] sm:$0xff]
    %v1023 = vld [vmem:[%s910 + $0x380] sm:$0xff]
    %v1024 = vld [vmem:[%s910 + $0x388] sm:$0xff]
    %v1025 = vld [vmem:[%s910 + $0x390] sm:$0xff]
    %v1026 = vld [vmem:[%s910 + $0x398] sm:$0xff]
    %v1027 = vld [vmem:[%s910 + $0x3a0] sm:$0xff]
    %v1028 = vld [vmem:[%s910 + $0x3a8] sm:$0xff]
    %v1029 = vld [vmem:[%s910 + $0x3b0] sm:$0xff]
    %v1030 = vld [vmem:[%s910 + $0x3b8] sm:$0xff]
    %v1031 = vld [vmem:[%s910 + $0x3c0] sm:$0xff]
    %v1032 = vld [vmem:[%s910 + $0x3c8] sm:$0xff]
    %v1033 = vld [vmem:[%s910 + $0x3d0] sm:$0xff]
    %v1034 = vld [vmem:[%s910 + $0x3d8] sm:$0xff]
    %v1035 = vld [vmem:[%s910 + $0x3e0] sm:$0xff]
    %v1036 = vld [vmem:[%s910 + $0x3e8] sm:$0xff]
    %v1037 = vld [vmem:[%s910 + $0x3f0] sm:$0xff]
    %v1038 = vld [vmem:[%s910 + $0x3f8] sm:$0xff]
    %v1039 = vld [vmem:[%s910 + $0x400] sm:$0xff]
    %v1040 = vld [vmem:[%s910 + $0x408] sm:$0xff]
    %v1041 = vld [vmem:[%s910 + $0x410] sm:$0xff]
    %v1042 = vld [vmem:[%s910 + $0x418] sm:$0xff]
    %v1043 = vld [vmem:[%s910 + $0x420] sm:$0xff]
    %v1044 = vld [vmem:[%s910 + $0x428] sm:$0xff]
    %v1045 = vld [vmem:[%s910 + $0x430] sm:$0xff]
    %v1046 = vld [vmem:[%s910 + $0x438] sm:$0xff]
    %v1047 = vld [vmem:[%s910 + $0x440] sm:$0xff]
    %v1048 = vld [vmem:[%s910 + $0x448] sm:$0xff]
    %v1049 = vld [vmem:[%s910 + $0x450] sm:$0xff]
    %v1050 = vld [vmem:[%s910 + $0x458] sm:$0xff]
    %v1051 = vld [vmem:[%s910 + $0x460] sm:$0xff]
    %v1052 = vld [vmem:[%s910 + $0x468] sm:$0xff]
    %v1053 = vld [vmem:[%s910 + $0x470] sm:$0xff]
    %v1054 = vld [vmem:[%s910 + $0x478] sm:$0xff]
    %v1055 = vld [vmem:[%s910 + $0x480] sm:$0xff]
    %v1056 = vld [vmem:[%s910 + $0x488] sm:$0xff]
    %v1057 = vld [vmem:[%s910 + $0x490] sm:$0xff]
    %v1058 = vld [vmem:[%s910 + $0x498] sm:$0xff]
    %v1059 = vld [vmem:[%s910 + $0x4a0] sm:$0xff]
    %v1060 = vld [vmem:[%s910 + $0x4a8] sm:$0xff]
    %v1061 = vld [vmem:[%s910 + $0x4b0] sm:$0xff]
    %v1062 = vld [vmem:[%s910 + $0x4b8] sm:$0xff]
    %v1063 = vld [vmem:[%s910 + $0x4c0] sm:$0xff]
    %v1064 = vld [vmem:[%s910 + $0x4c8] sm:$0xff]
    %v1065 = vld [vmem:[%s910 + $0x4d0] sm:$0xff]
    %v1066 = vld [vmem:[%s910 + $0x4d8] sm:$0xff]
    %v1067 = vld [vmem:[%s910 + $0x4e0] sm:$0xff]
    %v1068 = vld [vmem:[%s910 + $0x4e8] sm:$0xff]
    %v1069 = vld [vmem:[%s910 + $0x4f0] sm:$0xff]
    %v1070 = vld [vmem:[%s910 + $0x4f8] sm:$0xff]
    %v1071 = vld [vmem:[%s910 + $0x500] sm:$0xff]
    %v1072 = vld [vmem:[%s910 + $0x508] sm:$0xff]
    %v1073 = vld [vmem:[%s910 + $0x510] sm:$0xff]
    %v1074 = vld [vmem:[%s910 + $0x518] sm:$0xff]
    %v1075 = vld [vmem:[%s910 + $0x520] sm:$0xff]
    %v1076 = vld [vmem:[%s910 + $0x528] sm:$0xff]
    %v1077 = vld [vmem:[%s910 + $0x530] sm:$0xff]
    %v1078 = vld [vmem:[%s910 + $0x538] sm:$0xff]
    %v1079 = vld [vmem:[%s910 + $0x540] sm:$0xff]
    %v1080 = vld [vmem:[%s910 + $0x548] sm:$0xff]
    %v1081 = vld [vmem:[%s910 + $0x550] sm:$0xff]
    %v1082 = vld [vmem:[%s910 + $0x558] sm:$0xff]
    %v1083 = vld [vmem:[%s910 + $0x560] sm:$0xff]
    %v1084 = vld [vmem:[%s910 + $0x568] sm:$0xff]
    %v1085 = vld [vmem:[%s910 + $0x570] sm:$0xff]
    %v1086 = vld [vmem:[%s910 + $0x578] sm:$0xff]
    %v1087 = vld [vmem:[%s910 + $0x580] sm:$0xff]
    %v1088 = vld [vmem:[%s910 + $0x588] sm:$0xff]
    %v1089 = vld [vmem:[%s910 + $0x590] sm:$0xff]
    %v1090 = vld [vmem:[%s910 + $0x598] sm:$0xff]
    %v1091 = vld [vmem:[%s910 + $0x5a0] sm:$0xff]
    %v1092 = vld [vmem:[%s910 + $0x5a8] sm:$0xff]
    %v1093 = vld [vmem:[%s910 + $0x5b0] sm:$0xff]
    %v1094 = vld [vmem:[%s910 + $0x5b8] sm:$0xff]
    %v1095 = vld [vmem:[%s910 + $0x5c0] sm:$0xff]
    %v1096 = vld [vmem:[%s910 + $0x5c8] sm:$0xff]
    %v1097 = vld [vmem:[%s910 + $0x5d0] sm:$0xff]
    %v1098 = vld [vmem:[%s910 + $0x5d8] sm:$0xff]
    %v1099 = vld [vmem:[%s910 + $0x5e0] sm:$0xff]
    %v1100 = vld [vmem:[%s910 + $0x5e8] sm:$0xff]
    %v1101 = vld [vmem:[%s910 + $0x5f0] sm:$0xff]
    %v1102 = vld [vmem:[%s910 + $0x5f8] sm:$0xff]
    %v1103 = vld [vmem:[%s910 + $0x600] sm:$0xff]
    %v1104 = vld [vmem:[%s910 + $0x608] sm:$0xff]
    %v1105 = vld [vmem:[%s910 + $0x610] sm:$0xff]
    %v1106 = vld [vmem:[%s910 + $0x618] sm:$0xff]
    %v1107 = vld [vmem:[%s910 + $0x620] sm:$0xff]
    %v1108 = vld [vmem:[%s910 + $0x628] sm:$0xff]
    %v1109 = vld [vmem:[%s910 + $0x630] sm:$0xff]
    %v1110 = vld [vmem:[%s910 + $0x638] sm:$0xff]
    %v1111 = vld [vmem:[%s910 + $0x640] sm:$0xff]
    %v1112 = vld [vmem:[%s910 + $0x648] sm:$0xff]
    %v1113 = vld [vmem:[%s910 + $0x650] sm:$0xff]
    %v1114 = vld [vmem:[%s910 + $0x658] sm:$0xff]
    %v1115 = vld [vmem:[%s910 + $0x660] sm:$0xff]
    %v1116 = vld [vmem:[%s910 + $0x668] sm:$0xff]
    %v1117 = vld [vmem:[%s910 + $0x670] sm:$0xff]
    %v1118 = vld [vmem:[%s910 + $0x678] sm:$0xff]
    %v1119 = vld [vmem:[%s910 + $0x680] sm:$0xff]
    %v1120 = vld [vmem:[%s910 + $0x688] sm:$0xff]
    %v1121 = vld [vmem:[%s910 + $0x690] sm:$0xff]
    %v1122 = vld [vmem:[%s910 + $0x698] sm:$0xff]
    %v1123 = vld [vmem:[%s910 + $0x6a0] sm:$0xff]
    %v1124 = vld [vmem:[%s910 + $0x6a8] sm:$0xff]
    %v1125 = vld [vmem:[%s910 + $0x6b0] sm:$0xff]
    %v1126 = vld [vmem:[%s910 + $0x6b8] sm:$0xff]
    %v1127 = vld [vmem:[%s910 + $0x6c0] sm:$0xff]
    %v1128 = vld [vmem:[%s910 + $0x6c8] sm:$0xff]
    %v1129 = vld [vmem:[%s910 + $0x6d0] sm:$0xff]
    %v1130 = vld [vmem:[%s910 + $0x6d8] sm:$0xff]
    %v1131 = vld [vmem:[%s910 + $0x6e0] sm:$0xff]
    %v1132 = vld [vmem:[%s910 + $0x6e8] sm:$0xff]
    %v1133 = vld [vmem:[%s910 + $0x6f0] sm:$0xff]
    %v1134 = vld [vmem:[%s910 + $0x6f8] sm:$0xff]
    %v1135 = vld [vmem:[%s910 + $0x700] sm:$0xff]
    %v1136 = vld [vmem:[%s910 + $0x708] sm:$0xff]
    %v1137 = vld [vmem:[%s910 + $0x710] sm:$0xff]
    %v1138 = vld [vmem:[%s910 + $0x718] sm:$0xff]
    %v1139 = vld [vmem:[%s910 + $0x720] sm:$0xff]
    %v1140 = vld [vmem:[%s910 + $0x728] sm:$0xff]
    %v1141 = vld [vmem:[%s910 + $0x730] sm:$0xff]
    %v1142 = vld [vmem:[%s910 + $0x738] sm:$0xff]
    %v1143 = vld [vmem:[%s910 + $0x740] sm:$0xff]
    %v1144 = vld [vmem:[%s910 + $0x748] sm:$0xff]
    %v1145 = vld [vmem:[%s910 + $0x750] sm:$0xff]
    %v1146 = vld [vmem:[%s910 + $0x758] sm:$0xff]
    %v1147 = vld [vmem:[%s910 + $0x760] sm:$0xff]
    %v1148 = vld [vmem:[%s910 + $0x768] sm:$0xff]
    %v1149 = vld [vmem:[%s910 + $0x770] sm:$0xff]
    %v1150 = vld [vmem:[%s910 + $0x778] sm:$0xff]
    %v1151 = vld [vmem:[%s910 + $0x780] sm:$0xff]
    %v1152 = vld [vmem:[%s910 + $0x788] sm:$0xff]
    %v1153 = vld [vmem:[%s910 + $0x790] sm:$0xff]
    %v1154 = vld [vmem:[%s910 + $0x798] sm:$0xff]
    %v1155 = vld [vmem:[%s910 + $0x7a0] sm:$0xff]
    %v1156 = vld [vmem:[%s910 + $0x7a8] sm:$0xff]
    %v1157 = vld [vmem:[%s910 + $0x7b0] sm:$0xff]
    %v1158 = vld [vmem:[%s910 + $0x7b8] sm:$0xff]
    %v1159 = vld [vmem:[%s910 + $0x7c0] sm:$0xff]
    %v1160 = vld [vmem:[%s910 + $0x7c8] sm:$0xff]
    %v1161 = vld [vmem:[%s910 + $0x7d0] sm:$0xff]
    %v1162 = vld [vmem:[%s910 + $0x7d8] sm:$0xff]
    %v1163 = vld [vmem:[%s910 + $0x7e0] sm:$0xff]
    %v1164 = vld [vmem:[%s910 + $0x7e8] sm:$0xff]
    %v1165 = vld [vmem:[%s910 + $0x7f0] sm:$0xff]
    %v1166 = vld [vmem:[%s910 + $0x7f8] sm:$0xff]
    %s1167 = scalar_lea.vmem [#allocation10], 2
    %v1168 = vld [vmem:[%s1167] ss:$4 sm:$0xf]
    %v1170 = vperm.slane %v1168, 0
    %v1171 = vperm.slane %v1168, 1
    %v1172 = vperm.slane %v1168, 2
    %v1173 = vperm.slane %v1168, 3
    %1178 = vmatpush.msra.mxu0 %v971
    %1179 = vmatpush.msra.mxu0 %v967
    %1180 = vmatpush.msra.mxu0 %v963
    %1181 = vmatpush.msra.mxu0 %v959
    %1182 = vmatpush.msra.mxu0 %v955
    %1183 = vmatpush.msra.mxu0 %v951
    %1184 = vmatpush.msra.mxu0 %v947
    %1185 = vmatpush.msra.mxu0 %v943
    %1186 = vmatpush.msra.mxu0 %v939
    %1187 = vmatpush.msra.mxu0 %v935
    %1188 = vmatpush.msra.mxu0 %v931
    %1189 = vmatpush.msra.mxu0 %v927
    %1190 = vmatpush.msra.mxu0 %v923
    %1191 = vmatpush.msra.mxu0 %v919
    %1192 = vmatpush.msra.mxu0 %v915
    %1193 = vmatpush.msra.mxu0 %v911
    %1194 = vmatmul.f32.gmra.mxu0 %v902
    %v1195 = vpop.f32.mrf.mxu0
    %v1196 = vadd.f32 %v1170, %v1195
    %1197 = vmatmul.f32.gmra.mxu0 %v906
    %v1198 = vpop.f32.mrf.mxu0
    %v1199 = vadd.f32 %v1170, %v1198
    %1200 = vdwg.mxu0
    %1201 = vmatpush.msra.mxu0 %v1035
    %1202 = vmatpush.msra.mxu0 %v1031
    %1203 = vmatpush.msra.mxu0 %v1027
    %1204 = vmatpush.msra.mxu0 %v1023
    %1205 = vmatpush.msra.mxu0 %v1019
    %1206 = vmatpush.msra.mxu0 %v1015
    %1207 = vmatpush.msra.mxu0 %v1011
    %1208 = vmatpush.msra.mxu0 %v1007
    %1209 = vmatpush.msra.mxu0 %v1003
    %1210 = vmatpush.msra.mxu0 %v999
    %1211 = vmatpush.msra.mxu0 %v995
    %1212 = vmatpush.msra.mxu0 %v991
    %1213 = vmatpush.msra.mxu0 %v987
    %1214 = vmatpush.msra.mxu0 %v983
    %1215 = vmatpush.msra.mxu0 %v979
    %1216 = vmatpush.msra.mxu0 %v975
    %1217 = vmatmul.f32.gmra.mxu0 %v903
    %v1218 = vpop.f32.mrf.mxu0
    %v1219 = vadd.f32 %v1196, %v1218
    %1220 = vmatmul.f32.gmra.mxu0 %v907
    %v1221 = vpop.f32.mrf.mxu0
    %v1222 = vadd.f32 %v1199, %v1221
    %1223 = vdwg.mxu0
    %1224 = vmatpush.msra.mxu0 %v1099
    %1225 = vmatpush.msra.mxu0 %v1095
    %1226 = vmatpush.msra.mxu0 %v1091
    %1227 = vmatpush.msra.mxu0 %v1087
    %1228 = vmatpush.msra.mxu0 %v1083
    %1229 = vmatpush.msra.mxu0 %v1079
    %1230 = vmatpush.msra.mxu0 %v1075
    %1231 = vmatpush.msra.mxu0 %v1071
    %1232 = vmatpush.msra.mxu0 %v1067
    %1233 = vmatpush.msra.mxu0 %v1063
    %1234 = vmatpush.msra.mxu0 %v1059
    %1235 = vmatpush.msra.mxu0 %v1055
    %1236 = vmatpush.msra.mxu0 %v1051
    %1237 = vmatpush.msra.mxu0 %v1047
    %1238 = vmatpush.msra.mxu0 %v1043
    %1239 = vmatpush.msra.mxu0 %v1039
    %1240 = vmatmul.f32.gmra.mxu0 %v904
    %v1241 = vpop.f32.mrf.mxu0
    %v1242 = vadd.f32 %v1219, %v1241
    %1243 = vmatmul.f32.gmra.mxu0 %v908
    %v1244 = vpop.f32.mrf.mxu0
    %v1245 = vadd.f32 %v1222, %v1244
    %1246 = vdwg.mxu0
    %1247 = vmatpush.msra.mxu0 %v1163
    %1248 = vmatpush.msra.mxu0 %v1159
    %1249 = vmatpush.msra.mxu0 %v1155
    %1250 = vmatpush.msra.mxu0 %v1151
    %1251 = vmatpush.msra.mxu0 %v1147
    %1252 = vmatpush.msra.mxu0 %v1143
    %1253 = vmatpush.msra.mxu0 %v1139
    %1254 = vmatpush.msra.mxu0 %v1135
    %1255 = vmatpush.msra.mxu0 %v1131
    %1256 = vmatpush.msra.mxu0 %v1127
    %1257 = vmatpush.msra.mxu0 %v1123
    %1258 = vmatpush.msra.mxu0 %v1119
    %1259 = vmatpush.msra.mxu0 %v1115
    %1260 = vmatpush.msra.mxu0 %v1111
    %1261 = vmatpush.msra.mxu0 %v1107
    %1262 = vmatpush.msra.mxu0 %v1103
    %1263 = vmatmul.f32.gmra.mxu0 %v905
    %v1264 = vpop.f32.mrf.mxu0
    %v1265 = vadd.f32 %v1242, %v1264
    %1266 = vmatmul.f32.gmra.mxu0 %v909
    %v1267 = vpop.f32.mrf.mxu0
    %v1268 = vadd.f32 %v1245, %v1267
    %1269 = vdwg.mxu0
    %1270 = vmatpush.msra.mxu0 %v972
    %1271 = vmatpush.msra.mxu0 %v968
    %1272 = vmatpush.msra.mxu0 %v964
    %1273 = vmatpush.msra.mxu0 %v960
    %1274 = vmatpush.msra.mxu0 %v956
    %1275 = vmatpush.msra.mxu0 %v952
    %1276 = vmatpush.msra.mxu0 %v948
    %1277 = vmatpush.msra.mxu0 %v944
    %1278 = vmatpush.msra.mxu0 %v940
    %1279 = vmatpush.msra.mxu0 %v936
    %1280 = vmatpush.msra.mxu0 %v932
    %1281 = vmatpush.msra.mxu0 %v928
    %1282 = vmatpush.msra.mxu0 %v924
    %1283 = vmatpush.msra.mxu0 %v920
    %1284 = vmatpush.msra.mxu0 %v916
    %1285 = vmatpush.msra.mxu0 %v912
    %1286 = vmatmul.f32.gmra.mxu0 %v902
    %v1287 = vpop.f32.mrf.mxu0
    %v1288 = vadd.f32 %v1171, %v1287
    %1289 = vmatmul.f32.gmra.mxu0 %v906
    %v1290 = vpop.f32.mrf.mxu0
    %v1291 = vadd.f32 %v1171, %v1290
    %1292 = vdwg.mxu0
    %1293 = vmatpush.msra.mxu0 %v1036
    %1294 = vmatpush.msra.mxu0 %v1032
    %1295 = vmatpush.msra.mxu0 %v1028
    %1296 = vmatpush.msra.mxu0 %v1024
    %1297 = vmatpush.msra.mxu0 %v1020
    %1298 = vmatpush.msra.mxu0 %v1016
    %1299 = vmatpush.msra.mxu0 %v1012
    %1300 = vmatpush.msra.mxu0 %v1008
    %1301 = vmatpush.msra.mxu0 %v1004
    %1302 = vmatpush.msra.mxu0 %v1000
    %1303 = vmatpush.msra.mxu0 %v996
    %1304 = vmatpush.msra.mxu0 %v992
    %1305 = vmatpush.msra.mxu0 %v988
    %1306 = vmatpush.msra.mxu0 %v984
    %1307 = vmatpush.msra.mxu0 %v980
    %1308 = vmatpush.msra.mxu0 %v976
    %1309 = vmatmul.f32.gmra.mxu0 %v903
    %v1310 = vpop.f32.mrf.mxu0
    %v1311 = vadd.f32 %v1288, %v1310
    %1312 = vmatmul.f32.gmra.mxu0 %v907
    %v1313 = vpop.f32.mrf.mxu0
    %v1314 = vadd.f32 %v1291, %v1313
    %1315 = vdwg.mxu0
    %1316 = vmatpush.msra.mxu0 %v1100
    %1317 = vmatpush.msra.mxu0 %v1096
    %1318 = vmatpush.msra.mxu0 %v1092
    %1319 = vmatpush.msra.mxu0 %v1088
    %1320 = vmatpush.msra.mxu0 %v1084
    %1321 = vmatpush.msra.mxu0 %v1080
    %1322 = vmatpush.msra.mxu0 %v1076
    %1323 = vmatpush.msra.mxu0 %v1072
    %1324 = vmatpush.msra.mxu0 %v1068
    %1325 = vmatpush.msra.mxu0 %v1064
    %1326 = vmatpush.msra.mxu0 %v1060
    %1327 = vmatpush.msra.mxu0 %v1056
    %1328 = vmatpush.msra.mxu0 %v1052
    %1329 = vmatpush.msra.mxu0 %v1048
    %1330 = vmatpush.msra.mxu0 %v1044
    %1331 = vmatpush.msra.mxu0 %v1040
    %1332 = vmatmul.f32.gmra.mxu0 %v904
    %v1333 = vpop.f32.mrf.mxu0
    %v1334 = vadd.f32 %v1311, %v1333
    %1335 = vmatmul.f32.gmra.mxu0 %v908
    %v1336 = vpop.f32.mrf.mxu0
    %v1337 = vadd.f32 %v1314, %v1336
    %1338 = vdwg.mxu0
    %1339 = vmatpush.msra.mxu0 %v1164
    %1340 = vmatpush.msra.mxu0 %v1160
    %1341 = vmatpush.msra.mxu0 %v1156
    %1342 = vmatpush.msra.mxu0 %v1152
    %1343 = vmatpush.msra.mxu0 %v1148
    %1344 = vmatpush.msra.mxu0 %v1144
    %1345 = vmatpush.msra.mxu0 %v1140
    %1346 = vmatpush.msra.mxu0 %v1136
    %1347 = vmatpush.msra.mxu0 %v1132
    %1348 = vmatpush.msra.mxu0 %v1128
    %1349 = vmatpush.msra.mxu0 %v1124
    %1350 = vmatpush.msra.mxu0 %v1120
    %1351 = vmatpush.msra.mxu0 %v1116
    %1352 = vmatpush.msra.mxu0 %v1112
    %1353 = vmatpush.msra.mxu0 %v1108
    %1354 = vmatpush.msra.mxu0 %v1104
    %1355 = vmatmul.f32.gmra.mxu0 %v905
    %v1356 = vpop.f32.mrf.mxu0
    %v1357 = vadd.f32 %v1334, %v1356
    %1358 = vmatmul.f32.gmra.mxu0 %v909
    %v1359 = vpop.f32.mrf.mxu0
    %v1360 = vadd.f32 %v1337, %v1359
    %1361 = vdwg.mxu0
    %1362 = vmatpush.msra.mxu0 %v973
    %1363 = vmatpush.msra.mxu0 %v969
    %1364 = vmatpush.msra.mxu0 %v965
    %1365 = vmatpush.msra.mxu0 %v961
    %1366 = vmatpush.msra.mxu0 %v957
    %1367 = vmatpush.msra.mxu0 %v953
    %1368 = vmatpush.msra.mxu0 %v949
    %1369 = vmatpush.msra.mxu0 %v945
    %1370 = vmatpush.msra.mxu0 %v941
    %1371 = vmatpush.msra.mxu0 %v937
    %1372 = vmatpush.msra.mxu0 %v933
    %1373 = vmatpush.msra.mxu0 %v929
    %1374 = vmatpush.msra.mxu0 %v925
    %1375 = vmatpush.msra.mxu0 %v921
    %1376 = vmatpush.msra.mxu0 %v917
    %1377 = vmatpush.msra.mxu0 %v913
    %1378 = vmatmul.f32.gmra.mxu0 %v902
    %v1379 = vpop.f32.mrf.mxu0
    %v1380 = vadd.f32 %v1172, %v1379
    %1381 = vmatmul.f32.gmra.mxu0 %v906
    %v1382 = vpop.f32.mrf.mxu0
    %v1383 = vadd.f32 %v1172, %v1382
    %1384 = vdwg.mxu0
    %1385 = vmatpush.msra.mxu0 %v1037
    %1386 = vmatpush.msra.mxu0 %v1033
    %1387 = vmatpush.msra.mxu0 %v1029
    %1388 = vmatpush.msra.mxu0 %v1025
    %1389 = vmatpush.msra.mxu0 %v1021
    %1390 = vmatpush.msra.mxu0 %v1017
    %1391 = vmatpush.msra.mxu0 %v1013
    %1392 = vmatpush.msra.mxu0 %v1009
    %1393 = vmatpush.msra.mxu0 %v1005
    %1394 = vmatpush.msra.mxu0 %v1001
    %1395 = vmatpush.msra.mxu0 %v997
    %1396 = vmatpush.msra.mxu0 %v993
    %1397 = vmatpush.msra.mxu0 %v989
    %1398 = vmatpush.msra.mxu0 %v985
    %1399 = vmatpush.msra.mxu0 %v981
    %1400 = vmatpush.msra.mxu0 %v977
    %1401 = vmatmul.f32.gmra.mxu0 %v903
    %v1402 = vpop.f32.mrf.mxu0
    %v1403 = vadd.f32 %v1380, %v1402
    %1404 = vmatmul.f32.gmra.mxu0 %v907
    %v1405 = vpop.f32.mrf.mxu0
    %v1406 = vadd.f32 %v1383, %v1405
    %1407 = vdwg.mxu0
    %1408 = vmatpush.msra.mxu0 %v1101
    %1409 = vmatpush.msra.mxu0 %v1097
    %1410 = vmatpush.msra.mxu0 %v1093
    %1411 = vmatpush.msra.mxu0 %v1089
    %1412 = vmatpush.msra.mxu0 %v1085
    %1413 = vmatpush.msra.mxu0 %v1081
    %1414 = vmatpush.msra.mxu0 %v1077
    %1415 = vmatpush.msra.mxu0 %v1073
    %1416 = vmatpush.msra.mxu0 %v1069
    %1417 = vmatpush.msra.mxu0 %v1065
    %1418 = vmatpush.msra.mxu0 %v1061
    %1419 = vmatpush.msra.mxu0 %v1057
    %1420 = vmatpush.msra.mxu0 %v1053
    %1421 = vmatpush.msra.mxu0 %v1049
    %1422 = vmatpush.msra.mxu0 %v1045
    %1423 = vmatpush.msra.mxu0 %v1041
    %1424 = vmatmul.f32.gmra.mxu0 %v904
    %v1425 = vpop.f32.mrf.mxu0
    %v1426 = vadd.f32 %v1403, %v1425
    %1427 = vmatmul.f32.gmra.mxu0 %v908
    %v1428 = vpop.f32.mrf.mxu0
    %v1429 = vadd.f32 %v1406, %v1428
    %1430 = vdwg.mxu0
    %1431 = vmatpush.msra.mxu0 %v1165
    %1432 = vmatpush.msra.mxu0 %v1161
    %1433 = vmatpush.msra.mxu0 %v1157
    %1434 = vmatpush.msra.mxu0 %v1153
    %1435 = vmatpush.msra.mxu0 %v1149
    %1436 = vmatpush.msra.mxu0 %v1145
    %1437 = vmatpush.msra.mxu0 %v1141
    %1438 = vmatpush.msra.mxu0 %v1137
    %1439 = vmatpush.msra.mxu0 %v1133
    %1440 = vmatpush.msra.mxu0 %v1129
    %1441 = vmatpush.msra.mxu0 %v1125
    %1442 = vmatpush.msra.mxu0 %v1121
    %1443 = vmatpush.msra.mxu0 %v1117
    %1444 = vmatpush.msra.mxu0 %v1113
    %1445 = vmatpush.msra.mxu0 %v1109
    %1446 = vmatpush.msra.mxu0 %v1105
    %1447 = vmatmul.f32.gmra.mxu0 %v905
    %v1448 = vpop.f32.mrf.mxu0
    %v1449 = vadd.f32 %v1426, %v1448
    %1450 = vmatmul.f32.gmra.mxu0 %v909
    %v1451 = vpop.f32.mrf.mxu0
    %v1452 = vadd.f32 %v1429, %v1451
    %1453 = vdwg.mxu0
    %1454 = vmatpush.msra.mxu0 %v974
    %1455 = vmatpush.msra.mxu0 %v970
    %1456 = vmatpush.msra.mxu0 %v966
    %1457 = vmatpush.msra.mxu0 %v962
    %1458 = vmatpush.msra.mxu0 %v958
    %1459 = vmatpush.msra.mxu0 %v954
    %1460 = vmatpush.msra.mxu0 %v950
    %1461 = vmatpush.msra.mxu0 %v946
    %1462 = vmatpush.msra.mxu0 %v942
    %1463 = vmatpush.msra.mxu0 %v938
    %1464 = vmatpush.msra.mxu0 %v934
    %1465 = vmatpush.msra.mxu0 %v930
    %1466 = vmatpush.msra.mxu0 %v926
    %1467 = vmatpush.msra.mxu0 %v922
    %1468 = vmatpush.msra.mxu0 %v918
    %1469 = vmatpush.msra.mxu0 %v914
    %1470 = vmatmul.f32.gmra.mxu0 %v902
    %v1471 = vpop.f32.mrf.mxu0
    %v1472 = vadd.f32 %v1173, %v1471
    %1473 = vmatmul.f32.gmra.mxu0 %v906
    %v1474 = vpop.f32.mrf.mxu0
    %v1475 = vadd.f32 %v1173, %v1474
    %1476 = vdwg.mxu0
    %1477 = vmatpush.msra.mxu0 %v1038
    %1478 = vmatpush.msra.mxu0 %v1034
    %1479 = vmatpush.msra.mxu0 %v1030
    %1480 = vmatpush.msra.mxu0 %v1026
    %1481 = vmatpush.msra.mxu0 %v1022
    %1482 = vmatpush.msra.mxu0 %v1018
    %1483 = vmatpush.msra.mxu0 %v1014
    %1484 = vmatpush.msra.mxu0 %v1010
    %1485 = vmatpush.msra.mxu0 %v1006
    %1486 = vmatpush.msra.mxu0 %v1002
    %1487 = vmatpush.msra.mxu0 %v998
    %1488 = vmatpush.msra.mxu0 %v994
    %1489 = vmatpush.msra.mxu0 %v990
    %1490 = vmatpush.msra.mxu0 %v986
    %1491 = vmatpush.msra.mxu0 %v982
    %1492 = vmatpush.msra.mxu0 %v978
    %1493 = vmatmul.f32.gmra.mxu0 %v903
    %v1494 = vpop.f32.mrf.mxu0
    %v1495 = vadd.f32 %v1472, %v1494
    %1496 = vmatmul.f32.gmra.mxu0 %v907
    %v1497 = vpop.f32.mrf.mxu0
    %v1498 = vadd.f32 %v1475, %v1497
    %1499 = vdwg.mxu0
    %1500 = vmatpush.msra.mxu0 %v1102
    %1501 = vmatpush.msra.mxu0 %v1098
    %1502 = vmatpush.msra.mxu0 %v1094
    %1503 = vmatpush.msra.mxu0 %v1090
    %1504 = vmatpush.msra.mxu0 %v1086
    %1505 = vmatpush.msra.mxu0 %v1082
    %1506 = vmatpush.msra.mxu0 %v1078
    %1507 = vmatpush.msra.mxu0 %v1074
    %1508 = vmatpush.msra.mxu0 %v1070
    %1509 = vmatpush.msra.mxu0 %v1066
    %1510 = vmatpush.msra.mxu0 %v1062
    %1511 = vmatpush.msra.mxu0 %v1058
    %1512 = vmatpush.msra.mxu0 %v1054
    %1513 = vmatpush.msra.mxu0 %v1050
    %1514 = vmatpush.msra.mxu0 %v1046
    %1515 = vmatpush.msra.mxu0 %v1042
    %1516 = vmatmul.f32.gmra.mxu0 %v904
    %v1517 = vpop.f32.mrf.mxu0
    %v1518 = vadd.f32 %v1495, %v1517
    %1519 = vmatmul.f32.gmra.mxu0 %v908
    %v1520 = vpop.f32.mrf.mxu0
    %v1521 = vadd.f32 %v1498, %v1520
    %1522 = vdwg.mxu0
    %1523 = vmatpush.msra.mxu0 %v1166
    %1524 = vmatpush.msra.mxu0 %v1162
    %1525 = vmatpush.msra.mxu0 %v1158
    %1526 = vmatpush.msra.mxu0 %v1154
    %1527 = vmatpush.msra.mxu0 %v1150
    %1528 = vmatpush.msra.mxu0 %v1146
    %1529 = vmatpush.msra.mxu0 %v1142
    %1530 = vmatpush.msra.mxu0 %v1138
    %1531 = vmatpush.msra.mxu0 %v1134
    %1532 = vmatpush.msra.mxu0 %v1130
    %1533 = vmatpush.msra.mxu0 %v1126
    %1534 = vmatpush.msra.mxu0 %v1122
    %1535 = vmatpush.msra.mxu0 %v1118
    %1536 = vmatpush.msra.mxu0 %v1114
    %1537 = vmatpush.msra.mxu0 %v1110
    %1538 = vmatpush.msra.mxu0 %v1106
    %1539 = vmatmul.f32.gmra.mxu0 %v905
    %v1540 = vpop.f32.mrf.mxu0
    %v1541 = vadd.f32 %v1518, %v1540
    %1542 = vmatmul.f32.gmra.mxu0 %v909
    %v1543 = vpop.f32.mrf.mxu0
    %v1544 = vadd.f32 %v1521, %v1543
    %1545 = vdwg.mxu0
    %v1546 = vmax.f32 %v1265, 0.0
    %v1547 = vmax.f32 %v1357, 0.0
    %v1548 = vmax.f32 %v1449, 0.0
    %v1549 = vmax.f32 %v1541, 0.0
    %v1550 = vmax.f32 %v1268, 0.0
    %v1551 = vmax.f32 %v1360, 0.0
    %v1552 = vmax.f32 %v1452, 0.0
    %v1553 = vmax.f32 %v1544, 0.0
    %v1554 = vadd.f32 %v259, %v1546
    %v1555 = vadd.f32 %v260, %v1547
    %v1556 = vadd.f32 %v261, %v1548
    %v1557 = vadd.f32 %v262, %v1549
    %v1558 = vadd.f32 %v263, %v1550
    %v1559 = vadd.f32 %v264, %v1551
    %v1560 = vadd.f32 %v265, %v1552
    %v1561 = vadd.f32 %v266, %v1553
    %v1562 = vld [vmem:[#allocation8] sm:$0xf]
    %v1564 = vperm.slane %v1562, 0
    %v1565 = vperm.slane %v1562, 1
    %v1566 = vperm.slane %v1562, 2
    %v1567 = vperm.slane %v1562, 3
    %v1572 = vmul.f32 %v1554, %v1564
    %v1573 = vmul.f32 %v1555, %v1565
    %v1574 = vmul.f32 %v1556, %v1566
    %v1575 = vmul.f32 %v1557, %v1567
    %v1576 = vmul.f32 %v1558, %v1564
    %v1577 = vmul.f32 %v1559, %v1565
    %v1578 = vmul.f32 %v1560, %v1566
    %v1579 = vmul.f32 %v1561, %v1567
    %v1580 = vadd.f32 %v1572, %v1573
    %v1581 = vadd.f32 %v1580, %v1574
    %v1582 = vadd.f32 %v1581, %v1575
    %1583 = vadd.xlane.f32.xlu0 %v1582
    %v1584 = vpop.xlane.xlu0 %1583
    %v1585 = vadd.f32 %v1576, %v1577
    %v1586 = vadd.f32 %v1585, %v1578
    %v1587 = vadd.f32 %v1586, %v1579
    %1588 = vadd.xlane.f32.xlu0 %v1587
    %v1589 = vpop.xlane.xlu0 %1588
    %v1590 = vld [vmem:[#allocation2] sm:$0x1]
    %v1592 = vperm.slane %v1590, 0
    %v1594 = vadd.f32 %v1584, %v1592
    %v1595 = vadd.f32 %v1589, %v1592
    %v1596 = vsub.f32 0.0, %v1594
    %v1597 = vsub.f32 0.0, %v1595
    %v1598 = vmul.f32 %v1596, 1.442695
    %v1599 = vpow.pop %v1598
    %v1600 = vmul.f32 %v1597, 1.442695
    %v1601 = vpow.pop %v1600
    %v1602 = vadd.f32 %v1599, 1.0
    %v1603 = vadd.f32 %v1601, 1.0
    %v1604 = vrcp.pop %v1602
    %v1605 = vmul.f32 %v1602, %v1604
    %v1606 = vsub.f32 1.0, %v1605
    %v1607 = vmul.f32 %v1604, %v1606
    %v1608 = vadd.f32 %v1604, %v1607
    %vm1609 = vweird.f32 %v1602
    %vm1610 = vweird.f32 %v1604
    %vm1611 = vmor %vm1609, %vm1610
    %v1612 = vsel %vm1611, %v1604, %v1608
    %v1613 = vand.u32 2147483647, %v1602
    %vm1614 = vcmp.eq.f32.partialorder %v1613, 8.507059e+37
    %v1615 = vand.u32 %v1602, 2147483648
    %v1616 = vor.u32 1.1754944e-38, %v1615
    %v1617 = vsel %vm1614, %v1616, %v1612
    %v1618 = vmul.f32 1.0, %v1617
    %v1619 = vrcp.pop %v1603
    %v1620 = vmul.f32 %v1603, %v1619
    %v1621 = vsub.f32 1.0, %v1620
    %v1622 = vmul.f32 %v1619, %v1621
    %v1623 = vadd.f32 %v1619, %v1622
    %vm1624 = vweird.f32 %v1603
    %vm1625 = vweird.f32 %v1619
    %vm1626 = vmor %vm1624, %vm1625
    %v1627 = vsel %vm1626, %v1619, %v1623
    %v1628 = vand.u32 2147483647, %v1603
    %vm1629 = vcmp.eq.f32.partialorder %v1628, 8.507059e+37
    %v1630 = vand.u32 %v1603, 2147483648
    %v1631 = vor.u32 1.1754944e-38, %v1630
    %v1632 = vsel %vm1629, %v1631, %v1627
    %v1633 = vmul.f32 1.0, %v1632
    %vm1634 = vcmask 7168
    %1635 = vst.msk [vmem:[%s6] sm:$0xff] %vm1634, %v1618
    %1636 = vst.msk [vmem:[%s6 + $0x8] sm:$0xff] %vm1634, %v1633
    // Predicated region
    $region46: #{tpu_custom_call.1} parent=1 // pred_check
      _
    $region47: #{tpu_custom_call.1} parent=1 // pred_check_branch
      %1638 = sbr.rel (0) target = $region49
    $region48: #{tpu_custom_call.1} parent=1 // pred_region
      _
    $region49: #{tpu_custom_call.1} parent=1 // pred_fallthru
      _
    // Predicated region
    $region50: #{tpu_custom_call.1} parent=1 // pred_check
      _
    $region51: #{tpu_custom_call.1} parent=1 // pred_check_branch
      %1640 = sbr.rel (0) target = $region53
    $region52: #{tpu_custom_call.1} parent=1 // pred_region
      _
    $region53: #{tpu_custom_call.1} parent=1 // pred_fallthru
      _
    %1641 = vsyncpa [#allocation4], 1
    %1642 = vsyncpa [#allocation6], 1
    %1643 = vsyncpa [#allocation9], 1

</llo_original>
